<compile_context>
chip_gen: v7x
topology: tpu7x:2x2x1
jax: 0.10.0
libtpu: 0.0.40
codegen_flags: <defaults>
</compile_context>

<pallas_src>
import numpy as np
import jax
import jax.numpy as jnp
from jax.experimental import pallas as pl
from jax.experimental.pallas import tpu as pltpu

DIM = 3                    # point dimension
C_DIM = 16                 # latent code dim (small test config)
HIDDEN = 32                # hidden size (small test config)
N_BLOCKS = 5               # number of ResnetBlockFC blocks
F_REAL = DIM + C_DIM       # real feature rows: [p | c]
F_IN = 32                  # feature rows padded to a bf16-sublane-friendly size
TL = 256                   # lanes per in-kernel compute chunk (bounds vregs)
MAX_TM = 2048              # max lanes per grid step (amortizes step overhead)


# ----------------------------------------------------------------------------
# Pallas kernel: full point-wise MLP of PatchLocalDecoder.forward
#   layout: (features, points) tiles -> net^T = W @ x^T ; output is (1, TM)
#   lane-dense.  Grid block = TM points; inner pl.loop walks TL-lane chunks.
# ----------------------------------------------------------------------------
def decoder_mlp_kernel(x_ref, wpc_ref, bpc_ref, wblk_ref, bblk_ref,
                       wout_ref, bout_ref, out_ref):
    relu = lambda v: jnp.maximum(v, 0.0)
    n_chunks = x_ref.shape[-1] // TL          # static

    @pl.loop(0, n_chunks)
    def _(j):
        col = pl.multiple_of(j * TL, TL)
        xb = x_ref[:, pl.ds(col, TL)]                               # (F_IN, TL) bf16

        # net = fc_p(p) + b_p   (bias in f32, added after the matmul)
        net = jnp.dot(wpc_ref[0], xb,
                      preferred_element_type=jnp.float32) + bpc_ref[0]
        for i in range(N_BLOCKS):
            # net = net + fc_c[i](c)
            net = net + jnp.dot(wpc_ref[i + 1], xb,
                                preferred_element_type=jnp.float32) + bpc_ref[i + 1]
            # ResnetBlockFC: h = fc_0(relu(net)); dx = fc_1(relu(h)); net += dx
            h = jnp.dot(wblk_ref[2 * i], relu(net).astype(jnp.bfloat16),
                        preferred_element_type=jnp.float32) + bblk_ref[2 * i]
            dx = jnp.dot(wblk_ref[2 * i + 1], relu(h).astype(jnp.bfloat16),
                         preferred_element_type=jnp.float32) + bblk_ref[2 * i + 1]
            net = net + dx

        # fc_out as (1, H) @ (H, TL): lane-dense unmasked store.
        out_ref[:, pl.ds(col, TL)] = (
            jnp.dot(wout_ref[...], relu(net).astype(jnp.bfloat16),
                    preferred_element_type=jnp.float32) + bout_ref[...])


def _pick_tile(n):
    """Lanes per grid step: multiple of TL, <= MAX_TM, not much bigger than n."""
    t = ((n + TL - 1) // TL) * TL
    return int(min(MAX_TM, max(TL, t)))


def decoder_mlp(x_pad, packed, tm):
    """x_pad: (F_IN, n_pad) bf16 feature-major [p; c; 0-pad] -> (1, n_pad) f32."""
    f_in, n_pad = x_pad.shape
    assert f_in == F_IN and n_pad % tm == 0 and tm % TL == 0

    def full_spec(a):
        nd = a.ndim
        return pl.BlockSpec(a.shape, lambda i, nd=nd: (0,) * nd)

    return pl.pallas_call(
        decoder_mlp_kernel,
        out_shape=jax.ShapeDtypeStruct((1, n_pad), jnp.float32),
        grid_spec=pltpu.PrefetchScalarGridSpec(
            num_scalar_prefetch=0,
            grid=(n_pad // tm,),
            in_specs=[
                pl.BlockSpec((F_IN, tm), lambda i: (0, i)),   # bf16 [p|c] stack
                full_spec(packed['w_pc']),
                full_spec(packed['b_pc']),
                full_spec(packed['w_blk']),
                full_spec(packed['b_blk']),
                full_spec(packed['w_out']),
                full_spec(packed['b_out']),
            ],
            out_specs=pl.BlockSpec((1, tm), lambda i: (0, i)),
        ),
        compiler_params=pltpu.CompilerParams(
            dimension_semantics=("parallel",)),   # megacore / v7x 2-TC sharding
    )(x_pad, packed['w_pc'], packed['b_pc'], packed['w_blk'],
      packed['b_blk'], packed['w_out'], packed['b_out'])


# ----------------------------------------------------------------------------
# Plain-JAX glue: bilinear plane feature sampling (ConvONet custom grid_sample,
# align_corners=True semantics with clamped indices), produced FEATURE-MAJOR.
# ----------------------------------------------------------------------------
def grid_sample_2d_fm(feat, xy):
    """feat: (B, C, H, W), xy: (B, T, 2) in [0, 1] -> (C, B, T)."""
    B, C, H, W = feat.shape
    vgrid = 2.0 * xy - 1.0                       # [-1, 1]
    ix = (vgrid[..., 0] + 1.0) * 0.5 * (W - 1)   # x indexes W
    iy = (vgrid[..., 1] + 1.0) * 0.5 * (H - 1)   # y indexes H
    ix0 = jnp.floor(ix)
    iy0 = jnp.floor(iy)
    ix1 = ix0 + 1.0
    iy1 = iy0 + 1.0
    wx1 = ix - ix0
    wy1 = iy - iy0
    wx0 = 1.0 - wx1
    wy0 = 1.0 - wy1
    x0 = jnp.clip(ix0, 0, W - 1).astype(jnp.int32)
    x1 = jnp.clip(ix1, 0, W - 1).astype(jnp.int32)
    y0 = jnp.clip(iy0, 0, H - 1).astype(jnp.int32)
    y1 = jnp.clip(iy1, 0, H - 1).astype(jnp.int32)
    w00 = wy0 * wx0
    w01 = wy0 * wx1
    w10 = wy1 * wx0
    w11 = wy1 * wx1

    def per_batch(fb, x0b, x1b, y0b, y1b, w00b, w01b, w10b, w11b):
        g = lambda yy, xx: fb[:, yy, xx]          # (C, T)
        return (g(y0b, x0b) * w00b + g(y0b, x1b) * w01b +
                g(y1b, x0b) * w10b + g(y1b, x1b) * w11b)

    # out_axes=1 -> (C, B, T): already feature-major, no extra transpose pass.
    return jax.vmap(per_batch, out_axes=1)(feat, x0, x1, y0, y1,
                                           w00, w01, w10, w11)


def patch_local_decoder_forward(p_dict, c_plane, packed):
    p = p_dict['p'].astype(jnp.float32)           # (B, T, 3)
    p_n = p_dict['p_n']
    B, T, _ = p.shape
    N = B * T

    # aggregate local features from planes (c_dim != 0 path), feature-major
    c = jnp.zeros((C_DIM, B, T), jnp.float32)
    # TODO(synk): 3D 'grid' trilinear feature sampling, map2local and sin_cos
    # positional encoding are not implemented (default module config uses
    # 2D planes, linear encoding, no local coords).
    for k in ('xz', 'xy', 'yz'):
        if k in c_plane:
            c = c + grid_sample_2d_fm(c_plane[k], p_n[k].astype(jnp.float32))

    # single concat + single pad -> bf16 feature-major HBM input for the kernel
    c_fm = c.reshape(C_DIM, N)                                # (C, B*T)
    p_fm = jnp.transpose(p, (2, 0, 1)).reshape(DIM, N)        # (3, B*T)
    x_cat = jnp.concatenate([p_fm, c_fm], axis=0).astype(jnp.bfloat16)

    tm = _pick_tile(N)
    n_pad = pl.cdiv(N, tm) * tm
    x_pad = jnp.pad(x_cat, ((0, F_IN - F_REAL), (0, n_pad - N)))

    out = decoder_mlp(x_pad, packed, tm)
    return out[0, :N].reshape(B, T)


# ----------------------------------------------------------------------------
# Parameter construction / packing
# ----------------------------------------------------------------------------
def init_raw_params(key):
    ks = jax.random.split(key, 10)
    s = 0.1
    return {
        'wp': s * jax.random.normal(ks[0], (DIM, HIDDEN), jnp.float32),
        'bp': s * jax.random.normal(ks[1], (HIDDEN,), jnp.float32),
        'wc': s * jax.random.normal(ks[2], (N_BLOCKS, C_DIM, HIDDEN), jnp.float32),
        'bc': s * jax.random.normal(ks[3], (N_BLOCKS, HIDDEN), jnp.float32),
        'w0': s * jax.random.normal(ks[4], (N_BLOCKS, HIDDEN, HIDDEN), jnp.float32),
        'b0': s * jax.random.normal(ks[5], (N_BLOCKS, HIDDEN), jnp.float32),
        'w1': s * jax.random.normal(ks[6], (N_BLOCKS, HIDDEN, HIDDEN), jnp.float32),
        'b1': s * jax.random.normal(ks[7], (N_BLOCKS, HIDDEN), jnp.float32),
        'wo': s * jax.random.normal(ks[8], (HIDDEN, 1), jnp.float32),
        'bo': s * jax.random.normal(ks[9], (1,), jnp.float32),
    }


def pack_params(raw):
    """Pack per-layer weights into the feature-major kernel layout.

    w_pc[0]   = fc_p weight (H, F_IN) with p columns 0:DIM populated.
    w_pc[i+1] = fc_c[i] weight with c columns DIM:DIM+C_DIM populated.
    Biases stay f32 and are added after the matmuls.
    """
    w_pc = jnp.zeros((N_BLOCKS + 1, HIDDEN, F_IN), jnp.float32)
    b_pc = jnp.zeros((N_BLOCKS + 1, HIDDEN, 1), jnp.float32)
    w_pc = w_pc.at[0, :, 0:DIM].set(raw['wp'].T)
    b_pc = b_pc.at[0, :, 0].set(raw['bp'])
    for i in range(N_BLOCKS):
        w_pc = w_pc.at[i + 1, :, DIM:DIM + C_DIM].set(raw['wc'][i].T)
        b_pc = b_pc.at[i + 1, :, 0].set(raw['bc'][i])

    w_blk = jnp.stack(
        [raw['w0'][i // 2].T if i % 2 == 0 else raw['w1'][i // 2].T
         for i in range(2 * N_BLOCKS)])                        # (10, H, H)
    b_blk = jnp.stack(
        [raw['b0'][i // 2][:, None] if i % 2 == 0 else raw['b1'][i // 2][:, None]
         for i in range(2 * N_BLOCKS)])                        # (10, H, 1)

    return {
        'w_pc': w_pc.astype(jnp.bfloat16),
        'b_pc': b_pc,                                          # f32
        'w_blk': w_blk.astype(jnp.bfloat16),
        'b_blk': b_blk,                                        # f32
        'w_out': raw['wo'].T.astype(jnp.bfloat16),             # (1, H)
        'b_out': raw['bo'][None, :].astype(jnp.float32),       # (1, 1)
    }


# ----------------------------------------------------------------------------
# Pure-JAX reference for the MLP (bf16 matmul operands, f32 biases — mirrors
# the kernel's numerics).
# ----------------------------------------------------------------------------
def ref_mlp(p_flat, c_flat, raw):
    relu = lambda v: jnp.maximum(v, 0.0)
    bf = lambda a: a.astype(jnp.bfloat16)
    dot = lambda a, b: jnp.dot(bf(a), bf(b), preferred_element_type=jnp.float32)
    net = dot(p_flat, raw['wp']) + raw['bp']
    for i in range(N_BLOCKS):
        net = net + dot(c_flat, raw['wc'][i]) + raw['bc'][i]
        h = dot(relu(net), raw['w0'][i]) + raw['b0'][i]
        dx = dot(relu(h), raw['w1'][i]) + raw['b1'][i]
        net = net + dx
    return (dot(relu(net), raw['wo']) + raw['bo'])[..., 0]


if __name__ == "__main__":
    key = jax.random.PRNGKey(0)
    k_par, k_p, k_pn, k_c = jax.random.split(key, 4)
    raw_params = init_raw_params(k_par)
    packed = pack_params(raw_params)

    B, T, RES = 2, 8, 16
    p = jax.random.uniform(k_p, (B, T, DIM), jnp.float32, -0.5, 0.5)
    pn_keys = jax.random.split(k_pn, 3)
    c_keys = jax.random.split(k_c, 3)
    plane_names = ('xz', 'xy', 'yz')
    p_n = {name: jax.random.uniform(pk, (B, T, 2), jnp.float32, 0.0, 1.0)
           for name, pk in zip(plane_names, pn_keys)}
    c_plane = {name: jax.random.normal(ck, (B, C_DIM, RES, RES), jnp.float32)
               for name, ck in zip(plane_names, c_keys)}

    out = patch_local_decoder_forward({'p': p, 'p_n': p_n}, c_plane, packed)
    out = jax.block_until_ready(out)

    # correctness check against a pure-JAX reference of the same forward
    c_ref = jnp.zeros((C_DIM, B, T), jnp.float32)
    for k in plane_names:
        c_ref = c_ref + grid_sample_2d_fm(c_plane[k], p_n[k])
    c_ref = jnp.transpose(c_ref, (1, 2, 0))                    # (B, T, C)
    ref = ref_mlp(p.reshape(B * T, DIM),
                  c_ref.reshape(B * T, C_DIM), raw_params).reshape(B, T)
    np.testing.assert_allclose(np.asarray(out), np.asarray(ref),
                               rtol=5e-3, atol=5e-3)

    print("KERNEL_OK")
</pallas_src>

<mosaic_0001>
module attributes {stable_mosaic.version = 11 : i64} {
  func.func @decoder_mlp_kernel(%arg0: i32, %arg1: memref<32x256xbf16, #tpu.memory_space<vmem>>, %arg2: memref<6x32x32xbf16, #tpu.memory_space<vmem>>, %arg3: memref<6x32x1xf32, #tpu.memory_space<vmem>>, %arg4: memref<10x32x32xbf16, #tpu.memory_space<vmem>>, %arg5: memref<10x32x1xf32, #tpu.memory_space<vmem>>, %arg6: memref<1x32xbf16, #tpu.memory_space<vmem>>, %arg7: memref<1x1xf32, #tpu.memory_space<vmem>>, %arg8: memref<1x256xf32, #tpu.memory_space<vmem>>) attributes {dimension_semantics = [#tpu.dimension_semantics<parallel>], iteration_bounds = array<i64: 1>, scalar_prefetch = 0 : i64, scratch_operands = 0 : i64, tpu.core_type = #tpu.core_type<tc>, window_params = [{transform_indices = @transform_0, window_bounds = array<i64: 32, 256>}, {pipeline_mode = #tpu.pipeline_mode<synchronous>, transform_indices = @transform_1, window_bounds = array<i64: 6, 32, 32>}, {pipeline_mode = #tpu.pipeline_mode<synchronous>, transform_indices = @transform_2, window_bounds = array<i64: 6, 32, 1>}, {pipeline_mode = #tpu.pipeline_mode<synchronous>, transform_indices = @transform_3, window_bounds = array<i64: 10, 32, 32>}, {pipeline_mode = #tpu.pipeline_mode<synchronous>, transform_indices = @transform_4, window_bounds = array<i64: 10, 32, 1>}, {pipeline_mode = #tpu.pipeline_mode<synchronous>, transform_indices = @transform_5, window_bounds = array<i64: 1, 32>}, {pipeline_mode = #tpu.pipeline_mode<synchronous>, transform_indices = @transform_6, window_bounds = array<i64: 1, 1>}, {transform_indices = @transform_7, window_bounds = array<i64: 1, 256>}]} {
    %c0_i32 = arith.constant 0 : i32
    %c1_i32 = arith.constant 1 : i32
    %0 = arith.muli %c0_i32, %c1_i32 : i32
    %c0_i32_0 = arith.constant 0 : i32
    %1 = arith.addi %c0_i32_0, %0 : i32
    %c256_i32 = arith.constant 256 : i32
    %2 = arith.muli %1, %c256_i32 : i32
    %3 = tpu.assume_multiple %2, 256 : i32
    %c0 = arith.constant 0 : index
    %4 = arith.index_cast %3 : i32 to index
    %5 = vector.load %arg1[%c0, %4] : memref<32x256xbf16, #tpu.memory_space<vmem>>, vector<32x256xbf16>
    %c0_1 = arith.constant 0 : index
    %c0_2 = arith.constant 0 : index
    %c0_3 = arith.constant 0 : index
    %6 = vector.load %arg2[%c0_1, %c0_2, %c0_3] : memref<6x32x32xbf16, #tpu.memory_space<vmem>>, vector<1x32x32xbf16>
    %7 = vector.shape_cast %6 : vector<1x32x32xbf16> to vector<32x32xbf16>
    %cst = arith.constant dense<0.000000e+00> : vector<32x256xf32>
    %8 = tpu.matmul %7, %5, %cst {dimension_numbers = #tpu.dot_dimension_numbers<[1], [0], [0], [1], [0, 0, 1, 1], [], []>} : vector<32x32xbf16>, vector<32x256xbf16>, vector<32x256xf32> -> vector<32x256xf32>
    %c0_4 = arith.constant 0 : index
    %c0_5 = arith.constant 0 : index
    %c0_6 = arith.constant 0 : index
    %9 = vector.load %arg3[%c0_4, %c0_5, %c0_6] : memref<6x32x1xf32, #tpu.memory_space<vmem>>, vector<1x32x1xf32>
    %10 = vector.shape_cast %9 : vector<1x32x1xf32> to vector<32x1xf32>
    %11 = vector.broadcast %10 : vector<32x1xf32> to vector<32x256xf32>
    %12 = arith.addf %8, %11 : vector<32x256xf32>
    %c1 = arith.constant 1 : index
    %c0_7 = arith.constant 0 : index
    %c0_8 = arith.constant 0 : index
    %13 = vector.load %arg2[%c1, %c0_7, %c0_8] : memref<6x32x32xbf16, #tpu.memory_space<vmem>>, vector<1x32x32xbf16>
    %14 = vector.shape_cast %13 : vector<1x32x32xbf16> to vector<32x32xbf16>
    %cst_9 = arith.constant dense<0.000000e+00> : vector<32x256xf32>
    %15 = tpu.matmul %14, %5, %cst_9 {dimension_numbers = #tpu.dot_dimension_numbers<[1], [0], [0], [1], [0, 0, 1, 1], [], []>} : vector<32x32xbf16>, vector<32x256xbf16>, vector<32x256xf32> -> vector<32x256xf32>
    %16 = arith.addf %12, %15 : vector<32x256xf32>
    %c1_10 = arith.constant 1 : index
    %c0_11 = arith.constant 0 : index
    %c0_12 = arith.constant 0 : index
    %17 = vector.load %arg3[%c1_10, %c0_11, %c0_12] : memref<6x32x1xf32, #tpu.memory_space<vmem>>, vector<1x32x1xf32>
    %18 = vector.shape_cast %17 : vector<1x32x1xf32> to vector<32x1xf32>
    %19 = vector.broadcast %18 : vector<32x1xf32> to vector<32x256xf32>
    %20 = arith.addf %16, %19 : vector<32x256xf32>
    %c0_13 = arith.constant 0 : index
    %c0_14 = arith.constant 0 : index
    %c0_15 = arith.constant 0 : index
    %21 = vector.load %arg4[%c0_13, %c0_14, %c0_15] : memref<10x32x32xbf16, #tpu.memory_space<vmem>>, vector<1x32x32xbf16>
    %22 = vector.shape_cast %21 : vector<1x32x32xbf16> to vector<32x32xbf16>
    %cst_16 = arith.constant 0.000000e+00 : f32
    %23 = vector.broadcast %cst_16 : f32 to vector<32x256xf32>
    %24 = arith.maximumf %20, %23 : vector<32x256xf32>
    %25 = arith.truncf %24 : vector<32x256xf32> to vector<32x256xbf16>
    %cst_17 = arith.constant dense<0.000000e+00> : vector<32x256xf32>
    %26 = tpu.matmul %22, %25, %cst_17 {dimension_numbers = #tpu.dot_dimension_numbers<[1], [0], [0], [1], [0, 0, 1, 1], [], []>} : vector<32x32xbf16>, vector<32x256xbf16>, vector<32x256xf32> -> vector<32x256xf32>
    %c0_18 = arith.constant 0 : index
    %c0_19 = arith.constant 0 : index
    %c0_20 = arith.constant 0 : index
    %27 = vector.load %arg5[%c0_18, %c0_19, %c0_20] : memref<10x32x1xf32, #tpu.memory_space<vmem>>, vector<1x32x1xf32>
    %28 = vector.shape_cast %27 : vector<1x32x1xf32> to vector<32x1xf32>
    %29 = vector.broadcast %28 : vector<32x1xf32> to vector<32x256xf32>
    %30 = arith.addf %26, %29 : vector<32x256xf32>
    %c1_21 = arith.constant 1 : index
    %c0_22 = arith.constant 0 : index
    %c0_23 = arith.constant 0 : index
    %31 = vector.load %arg4[%c1_21, %c0_22, %c0_23] : memref<10x32x32xbf16, #tpu.memory_space<vmem>>, vector<1x32x32xbf16>
    %32 = vector.shape_cast %31 : vector<1x32x32xbf16> to vector<32x32xbf16>
    %cst_24 = arith.constant 0.000000e+00 : f32
    %33 = vector.broadcast %cst_24 : f32 to vector<32x256xf32>
    %34 = arith.maximumf %30, %33 : vector<32x256xf32>
    %35 = arith.truncf %34 : vector<32x256xf32> to vector<32x256xbf16>
    %cst_25 = arith.constant dense<0.000000e+00> : vector<32x256xf32>
    %36 = tpu.matmul %32, %35, %cst_25 {dimension_numbers = #tpu.dot_dimension_numbers<[1], [0], [0], [1], [0, 0, 1, 1], [], []>} : vector<32x32xbf16>, vector<32x256xbf16>, vector<32x256xf32> -> vector<32x256xf32>
    %c1_26 = arith.constant 1 : index
    %c0_27 = arith.constant 0 : index
    %c0_28 = arith.constant 0 : index
    %37 = vector.load %arg5[%c1_26, %c0_27, %c0_28] : memref<10x32x1xf32, #tpu.memory_space<vmem>>, vector<1x32x1xf32>
    %38 = vector.shape_cast %37 : vector<1x32x1xf32> to vector<32x1xf32>
    %39 = vector.broadcast %38 : vector<32x1xf32> to vector<32x256xf32>
    %40 = arith.addf %36, %39 : vector<32x256xf32>
    %41 = arith.addf %20, %40 : vector<32x256xf32>
    %c2 = arith.constant 2 : index
    %c0_29 = arith.constant 0 : index
    %c0_30 = arith.constant 0 : index
    %42 = vector.load %arg2[%c2, %c0_29, %c0_30] : memref<6x32x32xbf16, #tpu.memory_space<vmem>>, vector<1x32x32xbf16>
    %43 = vector.shape_cast %42 : vector<1x32x32xbf16> to vector<32x32xbf16>
    %cst_31 = arith.constant dense<0.000000e+00> : vector<32x256xf32>
    %44 = tpu.matmul %43, %5, %cst_31 {dimension_numbers = #tpu.dot_dimension_numbers<[1], [0], [0], [1], [0, 0, 1, 1], [], []>} : vector<32x32xbf16>, vector<32x256xbf16>, vector<32x256xf32> -> vector<32x256xf32>
    %45 = arith.addf %41, %44 : vector<32x256xf32>
    %c2_32 = arith.constant 2 : index
    %c0_33 = arith.constant 0 : index
    %c0_34 = arith.constant 0 : index
    %46 = vector.load %arg3[%c2_32, %c0_33, %c0_34] : memref<6x32x1xf32, #tpu.memory_space<vmem>>, vector<1x32x1xf32>
    %47 = vector.shape_cast %46 : vector<1x32x1xf32> to vector<32x1xf32>
    %48 = vector.broadcast %47 : vector<32x1xf32> to vector<32x256xf32>
    %49 = arith.addf %45, %48 : vector<32x256xf32>
    %c2_35 = arith.constant 2 : index
    %c0_36 = arith.constant 0 : index
    %c0_37 = arith.constant 0 : index
    %50 = vector.load %arg4[%c2_35, %c0_36, %c0_37] : memref<10x32x32xbf16, #tpu.memory_space<vmem>>, vector<1x32x32xbf16>
    %51 = vector.shape_cast %50 : vector<1x32x32xbf16> to vector<32x32xbf16>
    %cst_38 = arith.constant 0.000000e+00 : f32
    %52 = vector.broadcast %cst_38 : f32 to vector<32x256xf32>
    %53 = arith.maximumf %49, %52 : vector<32x256xf32>
    %54 = arith.truncf %53 : vector<32x256xf32> to vector<32x256xbf16>
    %cst_39 = arith.constant dense<0.000000e+00> : vector<32x256xf32>
    %55 = tpu.matmul %51, %54, %cst_39 {dimension_numbers = #tpu.dot_dimension_numbers<[1], [0], [0], [1], [0, 0, 1, 1], [], []>} : vector<32x32xbf16>, vector<32x256xbf16>, vector<32x256xf32> -> vector<32x256xf32>
    %c2_40 = arith.constant 2 : index
    %c0_41 = arith.constant 0 : index
    %c0_42 = arith.constant 0 : index
    %56 = vector.load %arg5[%c2_40, %c0_41, %c0_42] : memref<10x32x1xf32, #tpu.memory_space<vmem>>, vector<1x32x1xf32>
    %57 = vector.shape_cast %56 : vector<1x32x1xf32> to vector<32x1xf32>
    %58 = vector.broadcast %57 : vector<32x1xf32> to vector<32x256xf32>
    %59 = arith.addf %55, %58 : vector<32x256xf32>
    %c3 = arith.constant 3 : index
    %c0_43 = arith.constant 0 : index
    %c0_44 = arith.constant 0 : index
    %60 = vector.load %arg4[%c3, %c0_43, %c0_44] : memref<10x32x32xbf16, #tpu.memory_space<vmem>>, vector<1x32x32xbf16>
    %61 = vector.shape_cast %60 : vector<1x32x32xbf16> to vector<32x32xbf16>
    %cst_45 = arith.constant 0.000000e+00 : f32
    %62 = vector.broadcast %cst_45 : f32 to vector<32x256xf32>
    %63 = arith.maximumf %59, %62 : vector<32x256xf32>
    %64 = arith.truncf %63 : vector<32x256xf32> to vector<32x256xbf16>
    %cst_46 = arith.constant dense<0.000000e+00> : vector<32x256xf32>
    %65 = tpu.matmul %61, %64, %cst_46 {dimension_numbers = #tpu.dot_dimension_numbers<[1], [0], [0], [1], [0, 0, 1, 1], [], []>} : vector<32x32xbf16>, vector<32x256xbf16>, vector<32x256xf32> -> vector<32x256xf32>
    %c3_47 = arith.constant 3 : index
    %c0_48 = arith.constant 0 : index
    %c0_49 = arith.constant 0 : index
    %66 = vector.load %arg5[%c3_47, %c0_48, %c0_49] : memref<10x32x1xf32, #tpu.memory_space<vmem>>, vector<1x32x1xf32>
    %67 = vector.shape_cast %66 : vector<1x32x1xf32> to vector<32x1xf32>
    %68 = vector.broadcast %67 : vector<32x1xf32> to vector<32x256xf32>
    %69 = arith.addf %65, %68 : vector<32x256xf32>
    %70 = arith.addf %49, %69 : vector<32x256xf32>
    %c3_50 = arith.constant 3 : index
    %c0_51 = arith.constant 0 : index
    %c0_52 = arith.constant 0 : index
    %71 = vector.load %arg2[%c3_50, %c0_51, %c0_52] : memref<6x32x32xbf16, #tpu.memory_space<vmem>>, vector<1x32x32xbf16>
    %72 = vector.shape_cast %71 : vector<1x32x32xbf16> to vector<32x32xbf16>
    %cst_53 = arith.constant dense<0.000000e+00> : vector<32x256xf32>
    %73 = tpu.matmul %72, %5, %cst_53 {dimension_numbers = #tpu.dot_dimension_numbers<[1], [0], [0], [1], [0, 0, 1, 1], [], []>} : vector<32x32xbf16>, vector<32x256xbf16>, vector<32x256xf32> -> vector<32x256xf32>
    %74 = arith.addf %70, %73 : vector<32x256xf32>
    %c3_54 = arith.constant 3 : index
    %c0_55 = arith.constant 0 : index
    %c0_56 = arith.constant 0 : index
    %75 = vector.load %arg3[%c3_54, %c0_55, %c0_56] : memref<6x32x1xf32, #tpu.memory_space<vmem>>, vector<1x32x1xf32>
    %76 = vector.shape_cast %75 : vector<1x32x1xf32> to vector<32x1xf32>
    %77 = vector.broadcast %76 : vector<32x1xf32> to vector<32x256xf32>
    %78 = arith.addf %74, %77 : vector<32x256xf32>
    %c4 = arith.constant 4 : index
    %c0_57 = arith.constant 0 : index
    %c0_58 = arith.constant 0 : index
    %79 = vector.load %arg4[%c4, %c0_57, %c0_58] : memref<10x32x32xbf16, #tpu.memory_space<vmem>>, vector<1x32x32xbf16>
    %80 = vector.shape_cast %79 : vector<1x32x32xbf16> to vector<32x32xbf16>
    %cst_59 = arith.constant 0.000000e+00 : f32
    %81 = vector.broadcast %cst_59 : f32 to vector<32x256xf32>
    %82 = arith.maximumf %78, %81 : vector<32x256xf32>
    %83 = arith.truncf %82 : vector<32x256xf32> to vector<32x256xbf16>
    %cst_60 = arith.constant dense<0.000000e+00> : vector<32x256xf32>
    %84 = tpu.matmul %80, %83, %cst_60 {dimension_numbers = #tpu.dot_dimension_numbers<[1], [0], [0], [1], [0, 0, 1, 1], [], []>} : vector<32x32xbf16>, vector<32x256xbf16>, vector<32x256xf32> -> vector<32x256xf32>
    %c4_61 = arith.constant 4 : index
    %c0_62 = arith.constant 0 : index
    %c0_63 = arith.constant 0 : index
    %85 = vector.load %arg5[%c4_61, %c0_62, %c0_63] : memref<10x32x1xf32, #tpu.memory_space<vmem>>, vector<1x32x1xf32>
    %86 = vector.shape_cast %85 : vector<1x32x1xf32> to vector<32x1xf32>
    %87 = vector.broadcast %86 : vector<32x1xf32> to vector<32x256xf32>
    %88 = arith.addf %84, %87 : vector<32x256xf32>
    %c5 = arith.constant 5 : index
    %c0_64 = arith.constant 0 : index
    %c0_65 = arith.constant 0 : index
    %89 = vector.load %arg4[%c5, %c0_64, %c0_65] : memref<10x32x32xbf16, #tpu.memory_space<vmem>>, vector<1x32x32xbf16>
    %90 = vector.shape_cast %89 : vector<1x32x32xbf16> to vector<32x32xbf16>
    %cst_66 = arith.constant 0.000000e+00 : f32
    %91 = vector.broadcast %cst_66 : f32 to vector<32x256xf32>
    %92 = arith.maximumf %88, %91 : vector<32x256xf32>
    %93 = arith.truncf %92 : vector<32x256xf32> to vector<32x256xbf16>
    %cst_67 = arith.constant dense<0.000000e+00> : vector<32x256xf32>
    %94 = tpu.matmul %90, %93, %cst_67 {dimension_numbers = #tpu.dot_dimension_numbers<[1], [0], [0], [1], [0, 0, 1, 1], [], []>} : vector<32x32xbf16>, vector<32x256xbf16>, vector<32x256xf32> -> vector<32x256xf32>
    %c5_68 = arith.constant 5 : index
    %c0_69 = arith.constant 0 : index
    %c0_70 = arith.constant 0 : index
    %95 = vector.load %arg5[%c5_68, %c0_69, %c0_70] : memref<10x32x1xf32, #tpu.memory_space<vmem>>, vector<1x32x1xf32>
    %96 = vector.shape_cast %95 : vector<1x32x1xf32> to vector<32x1xf32>
    %97 = vector.broadcast %96 : vector<32x1xf32> to vector<32x256xf32>
    %98 = arith.addf %94, %97 : vector<32x256xf32>
    %99 = arith.addf %78, %98 : vector<32x256xf32>
    %c4_71 = arith.constant 4 : index
    %c0_72 = arith.constant 0 : index
    %c0_73 = arith.constant 0 : index
    %100 = vector.load %arg2[%c4_71, %c0_72, %c0_73] : memref<6x32x32xbf16, #tpu.memory_space<vmem>>, vector<1x32x32xbf16>
    %101 = vector.shape_cast %100 : vector<1x32x32xbf16> to vector<32x32xbf16>
    %cst_74 = arith.constant dense<0.000000e+00> : vector<32x256xf32>
    %102 = tpu.matmul %101, %5, %cst_74 {dimension_numbers = #tpu.dot_dimension_numbers<[1], [0], [0], [1], [0, 0, 1, 1], [], []>} : vector<32x32xbf16>, vector<32x256xbf16>, vector<32x256xf32> -> vector<32x256xf32>
    %103 = arith.addf %99, %102 : vector<32x256xf32>
    %c4_75 = arith.constant 4 : index
    %c0_76 = arith.constant 0 : index
    %c0_77 = arith.constant 0 : index
    %104 = vector.load %arg3[%c4_75, %c0_76, %c0_77] : memref<6x32x1xf32, #tpu.memory_space<vmem>>, vector<1x32x1xf32>
    %105 = vector.shape_cast %104 : vector<1x32x1xf32> to vector<32x1xf32>
    %106 = vector.broadcast %105 : vector<32x1xf32> to vector<32x256xf32>
    %107 = arith.addf %103, %106 : vector<32x256xf32>
    %c6 = arith.constant 6 : index
    %c0_78 = arith.constant 0 : index
    %c0_79 = arith.constant 0 : index
    %108 = vector.load %arg4[%c6, %c0_78, %c0_79] : memref<10x32x32xbf16, #tpu.memory_space<vmem>>, vector<1x32x32xbf16>
    %109 = vector.shape_cast %108 : vector<1x32x32xbf16> to vector<32x32xbf16>
    %cst_80 = arith.constant 0.000000e+00 : f32
    %110 = vector.broadcast %cst_80 : f32 to vector<32x256xf32>
    %111 = arith.maximumf %107, %110 : vector<32x256xf32>
    %112 = arith.truncf %111 : vector<32x256xf32> to vector<32x256xbf16>
    %cst_81 = arith.constant dense<0.000000e+00> : vector<32x256xf32>
    %113 = tpu.matmul %109, %112, %cst_81 {dimension_numbers = #tpu.dot_dimension_numbers<[1], [0], [0], [1], [0, 0, 1, 1], [], []>} : vector<32x32xbf16>, vector<32x256xbf16>, vector<32x256xf32> -> vector<32x256xf32>
    %c6_82 = arith.constant 6 : index
    %c0_83 = arith.constant 0 : index
    %c0_84 = arith.constant 0 : index
    %114 = vector.load %arg5[%c6_82, %c0_83, %c0_84] : memref<10x32x1xf32, #tpu.memory_space<vmem>>, vector<1x32x1xf32>
    %115 = vector.shape_cast %114 : vector<1x32x1xf32> to vector<32x1xf32>
    %116 = vector.broadcast %115 : vector<32x1xf32> to vector<32x256xf32>
    %117 = arith.addf %113, %116 : vector<32x256xf32>
    %c7 = arith.constant 7 : index
    %c0_85 = arith.constant 0 : index
    %c0_86 = arith.constant 0 : index
    %118 = vector.load %arg4[%c7, %c0_85, %c0_86] : memref<10x32x32xbf16, #tpu.memory_space<vmem>>, vector<1x32x32xbf16>
    %119 = vector.shape_cast %118 : vector<1x32x32xbf16> to vector<32x32xbf16>
    %cst_87 = arith.constant 0.000000e+00 : f32
    %120 = vector.broadcast %cst_87 : f32 to vector<32x256xf32>
    %121 = arith.maximumf %117, %120 : vector<32x256xf32>
    %122 = arith.truncf %121 : vector<32x256xf32> to vector<32x256xbf16>
    %cst_88 = arith.constant dense<0.000000e+00> : vector<32x256xf32>
    %123 = tpu.matmul %119, %122, %cst_88 {dimension_numbers = #tpu.dot_dimension_numbers<[1], [0], [0], [1], [0, 0, 1, 1], [], []>} : vector<32x32xbf16>, vector<32x256xbf16>, vector<32x256xf32> -> vector<32x256xf32>
    %c7_89 = arith.constant 7 : index
    %c0_90 = arith.constant 0 : index
    %c0_91 = arith.constant 0 : index
    %124 = vector.load %arg5[%c7_89, %c0_90, %c0_91] : memref<10x32x1xf32, #tpu.memory_space<vmem>>, vector<1x32x1xf32>
    %125 = vector.shape_cast %124 : vector<1x32x1xf32> to vector<32x1xf32>
    %126 = vector.broadcast %125 : vector<32x1xf32> to vector<32x256xf32>
    %127 = arith.addf %123, %126 : vector<32x256xf32>
    %128 = arith.addf %107, %127 : vector<32x256xf32>
    %c5_92 = arith.constant 5 : index
    %c0_93 = arith.constant 0 : index
    %c0_94 = arith.constant 0 : index
    %129 = vector.load %arg2[%c5_92, %c0_93, %c0_94] : memref<6x32x32xbf16, #tpu.memory_space<vmem>>, vector<1x32x32xbf16>
    %130 = vector.shape_cast %129 : vector<1x32x32xbf16> to vector<32x32xbf16>
    %cst_95 = arith.constant dense<0.000000e+00> : vector<32x256xf32>
    %131 = tpu.matmul %130, %5, %cst_95 {dimension_numbers = #tpu.dot_dimension_numbers<[1], [0], [0], [1], [0, 0, 1, 1], [], []>} : vector<32x32xbf16>, vector<32x256xbf16>, vector<32x256xf32> -> vector<32x256xf32>
    %132 = arith.addf %128, %131 : vector<32x256xf32>
    %c5_96 = arith.constant 5 : index
    %c0_97 = arith.constant 0 : index
    %c0_98 = arith.constant 0 : index
    %133 = vector.load %arg3[%c5_96, %c0_97, %c0_98] : memref<6x32x1xf32, #tpu.memory_space<vmem>>, vector<1x32x1xf32>
    %134 = vector.shape_cast %133 : vector<1x32x1xf32> to vector<32x1xf32>
    %135 = vector.broadcast %134 : vector<32x1xf32> to vector<32x256xf32>
    %136 = arith.addf %132, %135 : vector<32x256xf32>
    %c8 = arith.constant 8 : index
    %c0_99 = arith.constant 0 : index
    %c0_100 = arith.constant 0 : index
    %137 = vector.load %arg4[%c8, %c0_99, %c0_100] : memref<10x32x32xbf16, #tpu.memory_space<vmem>>, vector<1x32x32xbf16>
    %138 = vector.shape_cast %137 : vector<1x32x32xbf16> to vector<32x32xbf16>
    %cst_101 = arith.constant 0.000000e+00 : f32
    %139 = vector.broadcast %cst_101 : f32 to vector<32x256xf32>
    %140 = arith.maximumf %136, %139 : vector<32x256xf32>
    %141 = arith.truncf %140 : vector<32x256xf32> to vector<32x256xbf16>
    %cst_102 = arith.constant dense<0.000000e+00> : vector<32x256xf32>
    %142 = tpu.matmul %138, %141, %cst_102 {dimension_numbers = #tpu.dot_dimension_numbers<[1], [0], [0], [1], [0, 0, 1, 1], [], []>} : vector<32x32xbf16>, vector<32x256xbf16>, vector<32x256xf32> -> vector<32x256xf32>
    %c8_103 = arith.constant 8 : index
    %c0_104 = arith.constant 0 : index
    %c0_105 = arith.constant 0 : index
    %143 = vector.load %arg5[%c8_103, %c0_104, %c0_105] : memref<10x32x1xf32, #tpu.memory_space<vmem>>, vector<1x32x1xf32>
    %144 = vector.shape_cast %143 : vector<1x32x1xf32> to vector<32x1xf32>
    %145 = vector.broadcast %144 : vector<32x1xf32> to vector<32x256xf32>
    %146 = arith.addf %142, %145 : vector<32x256xf32>
    %c9 = arith.constant 9 : index
    %c0_106 = arith.constant 0 : index
    %c0_107 = arith.constant 0 : index
    %147 = vector.load %arg4[%c9, %c0_106, %c0_107] : memref<10x32x32xbf16, #tpu.memory_space<vmem>>, vector<1x32x32xbf16>
    %148 = vector.shape_cast %147 : vector<1x32x32xbf16> to vector<32x32xbf16>
    %cst_108 = arith.constant 0.000000e+00 : f32
    %149 = vector.broadcast %cst_108 : f32 to vector<32x256xf32>
    %150 = arith.maximumf %146, %149 : vector<32x256xf32>
    %151 = arith.truncf %150 : vector<32x256xf32> to vector<32x256xbf16>
    %cst_109 = arith.constant dense<0.000000e+00> : vector<32x256xf32>
    %152 = tpu.matmul %148, %151, %cst_109 {dimension_numbers = #tpu.dot_dimension_numbers<[1], [0], [0], [1], [0, 0, 1, 1], [], []>} : vector<32x32xbf16>, vector<32x256xbf16>, vector<32x256xf32> -> vector<32x256xf32>
    %c9_110 = arith.constant 9 : index
    %c0_111 = arith.constant 0 : index
    %c0_112 = arith.constant 0 : index
    %153 = vector.load %arg5[%c9_110, %c0_111, %c0_112] : memref<10x32x1xf32, #tpu.memory_space<vmem>>, vector<1x32x1xf32>
    %154 = vector.shape_cast %153 : vector<1x32x1xf32> to vector<32x1xf32>
    %155 = vector.broadcast %154 : vector<32x1xf32> to vector<32x256xf32>
    %156 = arith.addf %152, %155 : vector<32x256xf32>
    %157 = arith.addf %136, %156 : vector<32x256xf32>
    %c0_113 = arith.constant 0 : index
    %c0_114 = arith.constant 0 : index
    %158 = vector.load %arg6[%c0_113, %c0_114] : memref<1x32xbf16, #tpu.memory_space<vmem>>, vector<1x32xbf16>
    %cst_115 = arith.constant 0.000000e+00 : f32
    %159 = vector.broadcast %cst_115 : f32 to vector<32x256xf32>
    %160 = arith.maximumf %157, %159 : vector<32x256xf32>
    %161 = arith.truncf %160 : vector<32x256xf32> to vector<32x256xbf16>
    %cst_116 = arith.constant dense<0.000000e+00> : vector<1x256xf32>
    %162 = tpu.matmul %158, %161, %cst_116 {dimension_numbers = #tpu.dot_dimension_numbers<[1], [0], [0], [1], [0, 0, 1, 1], [], []>} : vector<1x32xbf16>, vector<32x256xbf16>, vector<1x256xf32> -> vector<1x256xf32>
    %c0_117 = arith.constant 0 : index
    %c0_118 = arith.constant 0 : index
    %163 = vector.load %arg7[%c0_117, %c0_118] : memref<1x1xf32, #tpu.memory_space<vmem>>, vector<1x1xf32>
    %164 = vector.broadcast %163 : vector<1x1xf32> to vector<1x256xf32>
    %165 = arith.addf %162, %164 : vector<1x256xf32>
    %c0_119 = arith.constant 0 : index
    %166 = arith.index_cast %3 : i32 to index
    %167 = vector.load %arg8[%c0_119, %166] : memref<1x256xf32, #tpu.memory_space<vmem>>, vector<1x256xf32>
    tpu.vector_store %arg8[%c0_119, %166], %165 {strides = array<i32>} : memref<1x256xf32, #tpu.memory_space<vmem>>, vector<1x256xf32>,
    %c1_i32_120 = arith.constant 1 : i32
    return
  }
  func.func @transform_0(%arg0: i32) -> (i32, i32) {
    %c0_i32 = arith.constant 0 : i32
    %c0_i32_0 = arith.constant 0 : i32
    return %c0_i32, %arg0 : i32, i32
  }
  func.func @transform_1(%arg0: i32) -> (i32, i32, i32) {
    %c0_i32 = arith.constant 0 : i32
    %c0_i32_0 = arith.constant 0 : i32
    %c0_i32_1 = arith.constant 0 : i32
    %c0_i32_2 = arith.constant 0 : i32
    return %c0_i32, %c0_i32_0, %c0_i32_1 : i32, i32, i32
  }
  func.func @transform_2(%arg0: i32) -> (i32, i32, i32) {
    %c0_i32 = arith.constant 0 : i32
    %c0_i32_0 = arith.constant 0 : i32
    %c0_i32_1 = arith.constant 0 : i32
    %c0_i32_2 = arith.constant 0 : i32
    return %c0_i32, %c0_i32_0, %c0_i32_1 : i32, i32, i32
  }
  func.func @transform_3(%arg0: i32) -> (i32, i32, i32) {
    %c0_i32 = arith.constant 0 : i32
    %c0_i32_0 = arith.constant 0 : i32
    %c0_i32_1 = arith.constant 0 : i32
    %c0_i32_2 = arith.constant 0 : i32
    return %c0_i32, %c0_i32_0, %c0_i32_1 : i32, i32, i32
  }
  func.func @transform_4(%arg0: i32) -> (i32, i32, i32) {
    %c0_i32 = arith.constant 0 : i32
    %c0_i32_0 = arith.constant 0 : i32
    %c0_i32_1 = arith.constant 0 : i32
    %c0_i32_2 = arith.constant 0 : i32
    return %c0_i32, %c0_i32_0, %c0_i32_1 : i32, i32, i32
  }
  func.func @transform_5(%arg0: i32) -> (i32, i32) {
    %c0_i32 = arith.constant 0 : i32
    %c0_i32_0 = arith.constant 0 : i32
    %c0_i32_1 = arith.constant 0 : i32
    return %c0_i32, %c0_i32_0 : i32, i32
  }
  func.func @transform_6(%arg0: i32) -> (i32, i32) {
    %c0_i32 = arith.constant 0 : i32
    %c0_i32_0 = arith.constant 0 : i32
    %c0_i32_1 = arith.constant 0 : i32
    return %c0_i32, %c0_i32_0 : i32, i32
  }
  func.func @transform_7(%arg0: i32) -> (i32, i32) {
    %c0_i32 = arith.constant 0 : i32
    %c0_i32_0 = arith.constant 0 : i32
    return %c0_i32, %arg0 : i32, i32
  }
}

</mosaic_0001>

<llo_original>
// kernel: tpu_custom_call.1
$region0: #{tpu_custom_call.1}
  #allocation0 [shape = 'u32[]', space=smem, size = 0x4, offset = 0x4, fixed_abs, tag = 'smem constant byte address 0x4 - core index']
  #allocation1 [shape = 'u32[144,128]{1,0:T(1,128)}', space=vmem, size = 0x12000, scoped, tag = 'internal scratch']
  #allocation2 [shape = 'f32[1,1]{1,0:T(1,128)S(1)}', space=vmem, size = 0x200, scoped, tag = 'scoped memory for tpu_custom_call.1']
  %s0 = inlined_call_operand.vmem [shape: bf16[32,256], index: 0, kind: input, shape index: {}]
  %s1 = inlined_call_operand.vmem [shape: bf16[6,32,32], index: 1, kind: input, shape index: {}]
  %s2 = inlined_call_operand.vmem [shape: f32[6,32,1], index: 2, kind: input, shape index: {}]
  %s3 = inlined_call_operand.vmem [shape: bf16[10,32,32], index: 3, kind: input, shape index: {}]
  %s4 = inlined_call_operand.vmem [shape: f32[10,32,1], index: 4, kind: input, shape index: {}]
  %s5 = inlined_call_operand.vmem [shape: bf16[1,32], index: 5, kind: input, shape index: {}]
  %s6 = inlined_call_operand.<no memory space> [shape: f32[1,1], index: 6, kind: input, shape index: {}]
  %s7 = inlined_call_operand.hbm [shape: f32[1,256], index: 7, kind: output, shape index: {}]
  %s8 = sld [smem:[#allocation0]]
  $region38: #{tpu_custom_call.1} parent=0
    _
  %s10 = ssub.s32 1, %s8
  %s11 = scalar_select 0, %s10, %s8
  %v12 = vstv %s6
  %13 = vst [vmem:[#allocation2] sm:$0x1] %v12
  $region1: #{tpu_custom_call.1} parent=0
    #allocation3 [shape = 'u8[1024]{0}', space=vmem, size = 0x400, scoped, tag = 'output window, operand 0, single buffered']
    #allocation4 [shape = 's32[1]{0}', space=sflag, size = 0x4, scoped, tag = 'scoped memory for tpu_custom_call.1']
    %14 = vsyncpa [#allocation4], 0
    // Predicated region
    $region2: #{tpu_custom_call.1} parent=1 // pred_check
      _
    $region3: #{tpu_custom_call.1} parent=1 // pred_check_branch
      %16 = sbr.rel (0) target = $region5
    $region4: #{tpu_custom_call.1} parent=1 // pred_region
      _
    $region5: #{tpu_custom_call.1} parent=1 // pred_fallthru
      _
    // Predicated region
    $region6: #{tpu_custom_call.1} parent=1 // pred_check
      _
    $region7: #{tpu_custom_call.1} parent=1 // pred_check_branch
      %18 = sbr.rel (0) target = $region9
    $region8: #{tpu_custom_call.1} parent=1 // pred_region
      _
    $region9: #{tpu_custom_call.1} parent=1 // pred_fallthru
      _
    // Predicated region
    $region10: #{tpu_custom_call.1} parent=1 // pred_check
      _
    $region11: #{tpu_custom_call.1} parent=1 // pred_check_branch
      %20 = sbr.rel (0) target = $region13
    $region12: #{tpu_custom_call.1} parent=1 // pred_region
      _
    $region13: #{tpu_custom_call.1} parent=1 // pred_fallthru
      _
    // Predicated region
    $region14: #{tpu_custom_call.1} parent=1 // pred_check
      _
    $region15: #{tpu_custom_call.1} parent=1 // pred_check_branch
      %22 = sbr.rel (0) target = $region17
    $region16: #{tpu_custom_call.1} parent=1 // pred_region
      _
    $region17: #{tpu_custom_call.1} parent=1 // pred_fallthru
      _
    // Predicated region
    $region18: #{tpu_custom_call.1} parent=1 // pred_check
      _
    $region19: #{tpu_custom_call.1} parent=1 // pred_check_branch
      %24 = sbr.rel (0) target = $region21
    $region20: #{tpu_custom_call.1} parent=1 // pred_region
      _
    $region21: #{tpu_custom_call.1} parent=1 // pred_fallthru
      _
    // Predicated region
    $region22: #{tpu_custom_call.1} parent=1 // pred_check
      _
    $region23: #{tpu_custom_call.1} parent=1 // pred_check_branch
      %26 = sbr.rel (0) target = $region25
    $region24: #{tpu_custom_call.1} parent=1 // pred_region
      _
    $region25: #{tpu_custom_call.1} parent=1 // pred_fallthru
      _
    // Predicated region
    $region26: #{tpu_custom_call.1} parent=1 // pred_check
      _
    $region27: #{tpu_custom_call.1} parent=1 // pred_check_branch
      %28 = sbr.rel (0) target = $region29
    $region28: #{tpu_custom_call.1} parent=1 // pred_region
      _
    $region29: #{tpu_custom_call.1} parent=1 // pred_fallthru
      _
    %v30 = vld [vmem:[%s0] sm:$0xff]
    %v31 = vld [vmem:[%s0 + $0x8] sm:$0xff]
    %v32 = vld [vmem:[%s0 + $0x10] sm:$0xff]
    %v33 = vld [vmem:[%s0 + $0x18] sm:$0xff]
    %v34 = vld [vmem:[%s1] sm:$0xf]
    %v35 = vld [vmem:[%s1 + $0x4] sm:$0xf]
    %v36 = vld [vmem:[%s1 + $0x8] sm:$0xf]
    %v37 = vld [vmem:[%s1 + $0xc] sm:$0xf]
    %v38 = vld [vmem:[%s2] sm:$0xff]
    %v39 = vld [vmem:[%s2 + $0x8] sm:$0xff]
    %v40 = vld [vmem:[%s2 + $0x10] sm:$0xff]
    %v41 = vld [vmem:[%s2 + $0x18] sm:$0xff]
    %43 = vset.pattern.permute.xlu0 0
    %44 = vperm.xlu0 %43, %v38
    %v45 = vpop.permute.xlu0 %44
    %48 = vset.pattern.permute.xlu0 0
    %49 = vperm.xlu0 %48, %v39
    %v50 = vpop.permute.xlu0 %49
    %53 = vset.pattern.permute.xlu0 0
    %54 = vperm.xlu0 %53, %v40
    %v55 = vpop.permute.xlu0 %54
    %58 = vset.pattern.permute.xlu0 0
    %59 = vperm.xlu0 %58, %v41
    %v60 = vpop.permute.xlu0 %59
    %v66 = vunpack.c.l.b16 %v34
    %v67 = vunpack.c.l.b16 %v35
    %v68 = vunpack.c.l.b16 %v36
    %v69 = vunpack.c.l.b16 %v37
    %v70 = vpack.c.b16 %v67, %v66
    %v71 = vpack.c.b16 %v69, %v68
    %v76 = vunpack.c.l.b16 %v30
    %v77 = vunpack.c.h.b16 %v30
    %v78 = vunpack.c.l.b16 %v31
    %v79 = vunpack.c.h.b16 %v31
    %v80 = vunpack.c.l.b16 %v32
    %v81 = vunpack.c.h.b16 %v32
    %v82 = vunpack.c.l.b16 %v33
    %v83 = vunpack.c.h.b16 %v33
    %v84 = vpack.c.b16 %v78, %v76
    %v85 = vpack.c.b16 %v79, %v77
    %v86 = vpack.c.b16 %v82, %v80
    %v87 = vpack.c.b16 %v83, %v81
    %vm92 = vcmask 261120
    %v94 = vsel %vm92, %v70, 0
    %v97 = vsel %vm92, %v71, 0
    %99 = vmatprep.subr.bf16.mxu0 %v85
    %100 = vmatpush1.bf16.msra.mxu0 %v84
    %101 = vmatprep.subr.bf16.mxu0 %v87
    %102 = vmatpush1.bf16.msra.mxu0 %v86
    %103 = vmatprep.subr.bf16.mxu0 0
    %104 = vmatpush1.bf16.msra.mxu0 0
    %105 = vmatprep.subr.bf16.mxu0 0
    %106 = vmatpush1.bf16.msra.mxu0 0
    %107 = vmatprep.subr.bf16.mxu0 0
    %108 = vmatpush1.bf16.msra.mxu0 0
    %109 = vmatprep.subr.bf16.mxu0 0
    %110 = vmatpush1.bf16.msra.mxu0 0
    %111 = vmatprep.subr.bf16.mxu0 0
    %112 = vmatpush1.bf16.msra.mxu0 0
    %113 = vmatprep.subr.bf16.mxu0 0
    %114 = vmatpush1.bf16.msra.mxu0 0
    %115 = vmatprep.subr.bf16.mxu0 0
    %116 = vmatpush1.bf16.msra.mxu0 0
    %117 = vmatprep.subr.bf16.mxu0 0
    %118 = vmatpush1.bf16.msra.mxu0 0
    %119 = vmatprep.subr.bf16.mxu0 0
    %120 = vmatpush1.bf16.msra.mxu0 0
    %121 = vmatprep.subr.bf16.mxu0 0
    %122 = vmatpush1.bf16.msra.mxu0 0
    %123 = vmatprep.subr.bf16.mxu0 0
    %124 = vmatpush1.bf16.msra.mxu0 0
    %125 = vmatprep.subr.bf16.mxu0 0
    %126 = vmatpush1.bf16.msra.mxu0 0
    %127 = vmatprep.subr.bf16.mxu0 0
    %128 = vmatpush1.bf16.msra.mxu0 0
    %129 = vmatprep.subr.bf16.mxu0 0
    %130 = vmatpush1.bf16.msra.mxu0 0
    %131 = vmatprep.mubr.bf16.mxu0 0
    %132 = vmatmul.mubr.bf16.gmra.mrb[0].mxu0 %v94
    %v133 = vpop.f32.mrb[0].mxu0
    %v134 = vadd.f32 %v45, %v133
    %v135 = vpop.f32.mrb[0].mxu0
    %v136 = vadd.f32 %v45, %v135
    %v137 = vpop.f32.mrb[0].mxu0
    %v138 = vadd.f32 %v50, %v137
    %v139 = vpop.f32.mrb[0].mxu0
    %v140 = vadd.f32 %v50, %v139
    %141 = vmatprep.mubr.bf16.mxu0 0
    %142 = vmatmul.mubr.bf16.gmra.mrb[0].mxu0 %v97
    %v143 = vpop.f32.mrb[0].mxu0
    %v144 = vadd.f32 %v55, %v143
    %v145 = vpop.f32.mrb[0].mxu0
    %v146 = vadd.f32 %v55, %v145
    %v147 = vpop.f32.mrb[0].mxu0
    %v148 = vadd.f32 %v60, %v147
    %v149 = vpop.f32.mrb[0].mxu0
    %v150 = vadd.f32 %v60, %v149
    %151 = vdwg.mxu0
    %s152 = scalar_lea.vmem %s1, 16
    %v153 = vld [vmem:[%s152] sm:$0xf]
    %v154 = vld [vmem:[%s152 + $0x4] sm:$0xf]
    %v155 = vld [vmem:[%s152 + $0x8] sm:$0xf]
    %v156 = vld [vmem:[%s152 + $0xc] sm:$0xf]
    %v161 = vunpack.c.l.b16 %v153
    %v162 = vunpack.c.l.b16 %v154
    %v163 = vunpack.c.l.b16 %v155
    %v164 = vunpack.c.l.b16 %v156
    %v165 = vpack.c.b16 %v162, %v161
    %v166 = vpack.c.b16 %v164, %v163
    %v168 = vsel %vm92, %v165, 0
    %v171 = vsel %vm92, %v166, 0
    %173 = vmatprep.subr.bf16.mxu0 %v85
    %174 = vmatpush1.bf16.msra.mxu0 %v84
    %175 = vmatprep.subr.bf16.mxu0 %v87
    %176 = vmatpush1.bf16.msra.mxu0 %v86
    %177 = vmatprep.subr.bf16.mxu0 0
    %178 = vmatpush1.bf16.msra.mxu0 0
    %179 = vmatprep.subr.bf16.mxu0 0
    %180 = vmatpush1.bf16.msra.mxu0 0
    %181 = vmatprep.subr.bf16.mxu0 0
    %182 = vmatpush1.bf16.msra.mxu0 0
    %183 = vmatprep.subr.bf16.mxu0 0
    %184 = vmatpush1.bf16.msra.mxu0 0
    %185 = vmatprep.subr.bf16.mxu0 0
    %186 = vmatpush1.bf16.msra.mxu0 0
    %187 = vmatprep.subr.bf16.mxu0 0
    %188 = vmatpush1.bf16.msra.mxu0 0
    %189 = vmatprep.subr.bf16.mxu0 0
    %190 = vmatpush1.bf16.msra.mxu0 0
    %191 = vmatprep.subr.bf16.mxu0 0
    %192 = vmatpush1.bf16.msra.mxu0 0
    %193 = vmatprep.subr.bf16.mxu0 0
    %194 = vmatpush1.bf16.msra.mxu0 0
    %195 = vmatprep.subr.bf16.mxu0 0
    %196 = vmatpush1.bf16.msra.mxu0 0
    %197 = vmatprep.subr.bf16.mxu0 0
    %198 = vmatpush1.bf16.msra.mxu0 0
    %199 = vmatprep.subr.bf16.mxu0 0
    %200 = vmatpush1.bf16.msra.mxu0 0
    %201 = vmatprep.subr.bf16.mxu0 0
    %202 = vmatpush1.bf16.msra.mxu0 0
    %203 = vmatprep.subr.bf16.mxu0 0
    %204 = vmatpush1.bf16.msra.mxu0 0
    %205 = vmatprep.mubr.bf16.mxu0 0
    %206 = vmatmul.mubr.bf16.gmra.mrb[0].mxu0 %v168
    %v207 = vpop.f32.mrb[0].mxu0
    %v208 = vadd.f32 0.0, %v207
    %v209 = vpop.f32.mrb[0].mxu0
    %v210 = vadd.f32 0.0, %v209
    %v211 = vpop.f32.mrb[0].mxu0
    %v212 = vadd.f32 0.0, %v211
    %v213 = vpop.f32.mrb[0].mxu0
    %v214 = vadd.f32 0.0, %v213
    %215 = vmatprep.mubr.bf16.mxu0 0
    %216 = vmatmul.mubr.bf16.gmra.mrb[0].mxu0 %v171
    %v217 = vpop.f32.mrb[0].mxu0
    %v218 = vadd.f32 0.0, %v217
    %v219 = vpop.f32.mrb[0].mxu0
    %v220 = vadd.f32 0.0, %v219
    %v221 = vpop.f32.mrb[0].mxu0
    %v222 = vadd.f32 0.0, %v221
    %v223 = vpop.f32.mrb[0].mxu0
    %v224 = vadd.f32 0.0, %v223
    %225 = vdwg.mxu0
    %v226 = vadd.f32 %v134, %v208
    %v227 = vadd.f32 %v136, %v210
    %v228 = vadd.f32 %v138, %v212
    %v229 = vadd.f32 %v140, %v214
    %v230 = vadd.f32 %v144, %v218
    %v231 = vadd.f32 %v146, %v220
    %v232 = vadd.f32 %v148, %v222
    %v233 = vadd.f32 %v150, %v224
    %s234 = scalar_lea.vmem %s2, 32
    %v235 = vld [vmem:[%s234] sm:$0xff]
    %v236 = vld [vmem:[%s234 + $0x8] sm:$0xff]
    %v237 = vld [vmem:[%s234 + $0x10] sm:$0xff]
    %v238 = vld [vmem:[%s234 + $0x18] sm:$0xff]
    %240 = vset.pattern.permute.xlu0 0
    %241 = vperm.xlu0 %240, %v235
    %v242 = vpop.permute.xlu0 %241
    %245 = vset.pattern.permute.xlu0 0
    %246 = vperm.xlu0 %245, %v236
    %v247 = vpop.permute.xlu0 %246
    %250 = vset.pattern.permute.xlu0 0
    %251 = vperm.xlu0 %250, %v237
    %v252 = vpop.permute.xlu0 %251
    %255 = vset.pattern.permute.xlu0 0
    %256 = vperm.xlu0 %255, %v238
    %v257 = vpop.permute.xlu0 %256
    %v259 = vadd.f32 %v226, %v242
    %v260 = vadd.f32 %v227, %v242
    %v261 = vadd.f32 %v228, %v247
    %v262 = vadd.f32 %v229, %v247
    %v263 = vadd.f32 %v230, %v252
    %v264 = vadd.f32 %v231, %v252
    %v265 = vadd.f32 %v232, %v257
    %v266 = vadd.f32 %v233, %v257
    %v267 = vld [vmem:[%s3] sm:$0xf]
    %v268 = vld [vmem:[%s3 + $0x4] sm:$0xf]
    %v269 = vld [vmem:[%s3 + $0x8] sm:$0xf]
    %v270 = vld [vmem:[%s3 + $0xc] sm:$0xf]
    %v271 = vmax.f32 %v259, 0.0
    %v272 = vmax.f32 %v260, 0.0
    %v273 = vmax.f32 %v261, 0.0
    %v274 = vmax.f32 %v262, 0.0
    %v275 = vmax.f32 %v263, 0.0
    %v276 = vmax.f32 %v264, 0.0
    %v277 = vmax.f32 %v265, 0.0
    %v278 = vmax.f32 %v266, 0.0
    %v279 = vpack.c.bf16 %v273, %v271
    %v280 = vpack.c.bf16 %v274, %v272
    %v281 = vpack.c.bf16 %v277, %v275
    %v282 = vpack.c.bf16 %v278, %v276
    %v283 = vld [vmem:[%s4] sm:$0xff]
    %v284 = vld [vmem:[%s4 + $0x8] sm:$0xff]
    %v285 = vld [vmem:[%s4 + $0x10] sm:$0xff]
    %v286 = vld [vmem:[%s4 + $0x18] sm:$0xff]
    %288 = vset.pattern.permute.xlu0 0
    %289 = vperm.xlu0 %288, %v283
    %v290 = vpop.permute.xlu0 %289
    %293 = vset.pattern.permute.xlu0 0
    %294 = vperm.xlu0 %293, %v284
    %v295 = vpop.permute.xlu0 %294
    %298 = vset.pattern.permute.xlu0 0
    %299 = vperm.xlu0 %298, %v285
    %v300 = vpop.permute.xlu0 %299
    %303 = vset.pattern.permute.xlu0 0
    %304 = vperm.xlu0 %303, %v286
    %v305 = vpop.permute.xlu0 %304
    %v311 = vunpack.c.l.b16 %v267
    %v312 = vunpack.c.l.b16 %v268
    %v313 = vunpack.c.l.b16 %v269
    %v314 = vunpack.c.l.b16 %v270
    %v315 = vpack.c.b16 %v312, %v311
    %v316 = vpack.c.b16 %v314, %v313
    %v318 = vsel %vm92, %v315, 0
    %v321 = vsel %vm92, %v316, 0
    %323 = vmatprep.subr.bf16.mxu0 %v280
    %324 = vmatpush1.bf16.msra.mxu0 %v279
    %325 = vmatprep.subr.bf16.mxu0 %v282
    %326 = vmatpush1.bf16.msra.mxu0 %v281
    %327 = vmatprep.subr.bf16.mxu0 0
    %328 = vmatpush1.bf16.msra.mxu0 0
    %329 = vmatprep.subr.bf16.mxu0 0
    %330 = vmatpush1.bf16.msra.mxu0 0
    %331 = vmatprep.subr.bf16.mxu0 0
    %332 = vmatpush1.bf16.msra.mxu0 0
    %333 = vmatprep.subr.bf16.mxu0 0
    %334 = vmatpush1.bf16.msra.mxu0 0
    %335 = vmatprep.subr.bf16.mxu0 0
    %336 = vmatpush1.bf16.msra.mxu0 0
    %337 = vmatprep.subr.bf16.mxu0 0
    %338 = vmatpush1.bf16.msra.mxu0 0
    %339 = vmatprep.subr.bf16.mxu0 0
    %340 = vmatpush1.bf16.msra.mxu0 0
    %341 = vmatprep.subr.bf16.mxu0 0
    %342 = vmatpush1.bf16.msra.mxu0 0
    %343 = vmatprep.subr.bf16.mxu0 0
    %344 = vmatpush1.bf16.msra.mxu0 0
    %345 = vmatprep.subr.bf16.mxu0 0
    %346 = vmatpush1.bf16.msra.mxu0 0
    %347 = vmatprep.subr.bf16.mxu0 0
    %348 = vmatpush1.bf16.msra.mxu0 0
    %349 = vmatprep.subr.bf16.mxu0 0
    %350 = vmatpush1.bf16.msra.mxu0 0
    %351 = vmatprep.subr.bf16.mxu0 0
    %352 = vmatpush1.bf16.msra.mxu0 0
    %353 = vmatprep.subr.bf16.mxu0 0
    %354 = vmatpush1.bf16.msra.mxu0 0
    %355 = vmatprep.mubr.bf16.mxu0 0
    %356 = vmatmul.mubr.bf16.gmra.mrb[0].mxu0 %v318
    %v357 = vpop.f32.mrb[0].mxu0
    %v358 = vadd.f32 %v290, %v357
    %v359 = vpop.f32.mrb[0].mxu0
    %v360 = vadd.f32 %v290, %v359
    %v361 = vpop.f32.mrb[0].mxu0
    %v362 = vadd.f32 %v295, %v361
    %v363 = vpop.f32.mrb[0].mxu0
    %v364 = vadd.f32 %v295, %v363
    %365 = vmatprep.mubr.bf16.mxu0 0
    %366 = vmatmul.mubr.bf16.gmra.mrb[0].mxu0 %v321
    %v367 = vpop.f32.mrb[0].mxu0
    %v368 = vadd.f32 %v300, %v367
    %v369 = vpop.f32.mrb[0].mxu0
    %v370 = vadd.f32 %v300, %v369
    %v371 = vpop.f32.mrb[0].mxu0
    %v372 = vadd.f32 %v305, %v371
    %v373 = vpop.f32.mrb[0].mxu0
    %v374 = vadd.f32 %v305, %v373
    %375 = vdwg.mxu0
    %s376 = scalar_lea.vmem %s3, 16
    %v377 = vld [vmem:[%s376] sm:$0xf]
    %v378 = vld [vmem:[%s376 + $0x4] sm:$0xf]
    %v379 = vld [vmem:[%s376 + $0x8] sm:$0xf]
    %v380 = vld [vmem:[%s376 + $0xc] sm:$0xf]
    %v381 = vmax.f32 %v358, 0.0
    %v382 = vmax.f32 %v360, 0.0
    %v383 = vmax.f32 %v362, 0.0
    %v384 = vmax.f32 %v364, 0.0
    %v385 = vmax.f32 %v368, 0.0
    %v386 = vmax.f32 %v370, 0.0
    %v387 = vmax.f32 %v372, 0.0
    %v388 = vmax.f32 %v374, 0.0
    %v389 = vpack.c.bf16 %v383, %v381
    %v390 = vpack.c.bf16 %v384, %v382
    %v391 = vpack.c.bf16 %v387, %v385
    %v392 = vpack.c.bf16 %v388, %v386
    %s393 = scalar_lea.vmem %s4, 32
    %v394 = vld [vmem:[%s393] sm:$0xff]
    %v395 = vld [vmem:[%s393 + $0x8] sm:$0xff]
    %v396 = vld [vmem:[%s393 + $0x10] sm:$0xff]
    %v397 = vld [vmem:[%s393 + $0x18] sm:$0xff]
    %399 = vset.pattern.permute.xlu0 0
    %400 = vperm.xlu0 %399, %v394
    %v401 = vpop.permute.xlu0 %400
    %404 = vset.pattern.permute.xlu0 0
    %405 = vperm.xlu0 %404, %v395
    %v406 = vpop.permute.xlu0 %405
    %409 = vset.pattern.permute.xlu0 0
    %410 = vperm.xlu0 %409, %v396
    %v411 = vpop.permute.xlu0 %410
    %414 = vset.pattern.permute.xlu0 0
    %415 = vperm.xlu0 %414, %v397
    %v416 = vpop.permute.xlu0 %415
    %v422 = vunpack.c.l.b16 %v377
    %v423 = vunpack.c.l.b16 %v378
    %v424 = vunpack.c.l.b16 %v379
    %v425 = vunpack.c.l.b16 %v380
    %v426 = vpack.c.b16 %v423, %v422
    %v427 = vpack.c.b16 %v425, %v424
    %v429 = vsel %vm92, %v426, 0
    %v432 = vsel %vm92, %v427, 0
    %434 = vmatprep.subr.bf16.mxu0 %v390
    %435 = vmatpush1.bf16.msra.mxu0 %v389
    %436 = vmatprep.subr.bf16.mxu0 %v392
    %437 = vmatpush1.bf16.msra.mxu0 %v391
    %438 = vmatprep.subr.bf16.mxu0 0
    %439 = vmatpush1.bf16.msra.mxu0 0
    %440 = vmatprep.subr.bf16.mxu0 0
    %441 = vmatpush1.bf16.msra.mxu0 0
    %442 = vmatprep.subr.bf16.mxu0 0
    %443 = vmatpush1.bf16.msra.mxu0 0
    %444 = vmatprep.subr.bf16.mxu0 0
    %445 = vmatpush1.bf16.msra.mxu0 0
    %446 = vmatprep.subr.bf16.mxu0 0
    %447 = vmatpush1.bf16.msra.mxu0 0
    %448 = vmatprep.subr.bf16.mxu0 0
    %449 = vmatpush1.bf16.msra.mxu0 0
    %450 = vmatprep.subr.bf16.mxu0 0
    %451 = vmatpush1.bf16.msra.mxu0 0
    %452 = vmatprep.subr.bf16.mxu0 0
    %453 = vmatpush1.bf16.msra.mxu0 0
    %454 = vmatprep.subr.bf16.mxu0 0
    %455 = vmatpush1.bf16.msra.mxu0 0
    %456 = vmatprep.subr.bf16.mxu0 0
    %457 = vmatpush1.bf16.msra.mxu0 0
    %458 = vmatprep.subr.bf16.mxu0 0
    %459 = vmatpush1.bf16.msra.mxu0 0
    %460 = vmatprep.subr.bf16.mxu0 0
    %461 = vmatpush1.bf16.msra.mxu0 0
    %462 = vmatprep.subr.bf16.mxu0 0
    %463 = vmatpush1.bf16.msra.mxu0 0
    %464 = vmatprep.subr.bf16.mxu0 0
    %465 = vmatpush1.bf16.msra.mxu0 0
    %466 = vmatprep.mubr.bf16.mxu0 0
    %467 = vmatmul.mubr.bf16.gmra.mrb[0].mxu0 %v429
    %v468 = vpop.f32.mrb[0].mxu0
    %v469 = vadd.f32 %v401, %v468
    %v470 = vpop.f32.mrb[0].mxu0
    %v471 = vadd.f32 %v401, %v470
    %v472 = vpop.f32.mrb[0].mxu0
    %v473 = vadd.f32 %v406, %v472
    %v474 = vpop.f32.mrb[0].mxu0
    %v475 = vadd.f32 %v406, %v474
    %476 = vmatprep.mubr.bf16.mxu0 0
    %477 = vmatmul.mubr.bf16.gmra.mrb[0].mxu0 %v432
    %v478 = vpop.f32.mrb[0].mxu0
    %v479 = vadd.f32 %v411, %v478
    %v480 = vpop.f32.mrb[0].mxu0
    %v481 = vadd.f32 %v411, %v480
    %v482 = vpop.f32.mrb[0].mxu0
    %v483 = vadd.f32 %v416, %v482
    %v484 = vpop.f32.mrb[0].mxu0
    %v485 = vadd.f32 %v416, %v484
    %486 = vdwg.mxu0
    %v487 = vadd.f32 %v259, %v469
    %v488 = vadd.f32 %v260, %v471
    %v489 = vadd.f32 %v261, %v473
    %v490 = vadd.f32 %v262, %v475
    %v491 = vadd.f32 %v263, %v479
    %v492 = vadd.f32 %v264, %v481
    %v493 = vadd.f32 %v265, %v483
    %v494 = vadd.f32 %v266, %v485
    %s495 = scalar_lea.vmem %s1, 32
    %v496 = vld [vmem:[%s495] sm:$0xf]
    %v497 = vld [vmem:[%s495 + $0x4] sm:$0xf]
    %v498 = vld [vmem:[%s495 + $0x8] sm:$0xf]
    %v499 = vld [vmem:[%s495 + $0xc] sm:$0xf]
    %v504 = vunpack.c.l.b16 %v496
    %v505 = vunpack.c.l.b16 %v497
    %v506 = vunpack.c.l.b16 %v498
    %v507 = vunpack.c.l.b16 %v499
    %v508 = vpack.c.b16 %v505, %v504
    %v509 = vpack.c.b16 %v507, %v506
    %v511 = vsel %vm92, %v508, 0
    %v514 = vsel %vm92, %v509, 0
    %516 = vmatprep.subr.bf16.mxu0 %v85
    %517 = vmatpush1.bf16.msra.mxu0 %v84
    %518 = vmatprep.subr.bf16.mxu0 %v87
    %519 = vmatpush1.bf16.msra.mxu0 %v86
    %520 = vmatprep.subr.bf16.mxu0 0
    %521 = vmatpush1.bf16.msra.mxu0 0
    %522 = vmatprep.subr.bf16.mxu0 0
    %523 = vmatpush1.bf16.msra.mxu0 0
    %524 = vmatprep.subr.bf16.mxu0 0
    %525 = vmatpush1.bf16.msra.mxu0 0
    %526 = vmatprep.subr.bf16.mxu0 0
    %527 = vmatpush1.bf16.msra.mxu0 0
    %528 = vmatprep.subr.bf16.mxu0 0
    %529 = vmatpush1.bf16.msra.mxu0 0
    %530 = vmatprep.subr.bf16.mxu0 0
    %531 = vmatpush1.bf16.msra.mxu0 0
    %532 = vmatprep.subr.bf16.mxu0 0
    %533 = vmatpush1.bf16.msra.mxu0 0
    %534 = vmatprep.subr.bf16.mxu0 0
    %535 = vmatpush1.bf16.msra.mxu0 0
    %536 = vmatprep.subr.bf16.mxu0 0
    %537 = vmatpush1.bf16.msra.mxu0 0
    %538 = vmatprep.subr.bf16.mxu0 0
    %539 = vmatpush1.bf16.msra.mxu0 0
    %540 = vmatprep.subr.bf16.mxu0 0
    %541 = vmatpush1.bf16.msra.mxu0 0
    %542 = vmatprep.subr.bf16.mxu0 0
    %543 = vmatpush1.bf16.msra.mxu0 0
    %544 = vmatprep.subr.bf16.mxu0 0
    %545 = vmatpush1.bf16.msra.mxu0 0
    %546 = vmatprep.subr.bf16.mxu0 0
    %547 = vmatpush1.bf16.msra.mxu0 0
    %548 = vmatprep.mubr.bf16.mxu0 0
    %549 = vmatmul.mubr.bf16.gmra.mrb[0].mxu0 %v511
    %v550 = vpop.f32.mrb[0].mxu0
    %v551 = vadd.f32 0.0, %v550
    %v552 = vpop.f32.mrb[0].mxu0
    %v553 = vadd.f32 0.0, %v552
    %v554 = vpop.f32.mrb[0].mxu0
    %v555 = vadd.f32 0.0, %v554
    %v556 = vpop.f32.mrb[0].mxu0
    %v557 = vadd.f32 0.0, %v556
    %558 = vmatprep.mubr.bf16.mxu0 0
    %559 = vmatmul.mubr.bf16.gmra.mrb[0].mxu0 %v514
    %v560 = vpop.f32.mrb[0].mxu0
    %v561 = vadd.f32 0.0, %v560
    %v562 = vpop.f32.mrb[0].mxu0
    %v563 = vadd.f32 0.0, %v562
    %v564 = vpop.f32.mrb[0].mxu0
    %v565 = vadd.f32 0.0, %v564
    %v566 = vpop.f32.mrb[0].mxu0
    %v567 = vadd.f32 0.0, %v566
    %568 = vdwg.mxu0
    %v569 = vadd.f32 %v487, %v551
    %v570 = vadd.f32 %v488, %v553
    %v571 = vadd.f32 %v489, %v555
    %v572 = vadd.f32 %v490, %v557
    %v573 = vadd.f32 %v491, %v561
    %v574 = vadd.f32 %v492, %v563
    %v575 = vadd.f32 %v493, %v565
    %v576 = vadd.f32 %v494, %v567
    %s577 = scalar_lea.vmem %s2, 64
    %v578 = vld [vmem:[%s577] sm:$0xff]
    %v579 = vld [vmem:[%s577 + $0x8] sm:$0xff]
    %v580 = vld [vmem:[%s577 + $0x10] sm:$0xff]
    %v581 = vld [vmem:[%s577 + $0x18] sm:$0xff]
    %583 = vset.pattern.permute.xlu0 0
    %584 = vperm.xlu0 %583, %v578
    %v585 = vpop.permute.xlu0 %584
    %588 = vset.pattern.permute.xlu0 0
    %589 = vperm.xlu0 %588, %v579
    %v590 = vpop.permute.xlu0 %589
    %593 = vset.pattern.permute.xlu0 0
    %594 = vperm.xlu0 %593, %v580
    %v595 = vpop.permute.xlu0 %594
    %598 = vset.pattern.permute.xlu0 0
    %599 = vperm.xlu0 %598, %v581
    %v600 = vpop.permute.xlu0 %599
    %v602 = vadd.f32 %v569, %v585
    %v603 = vadd.f32 %v570, %v585
    %v604 = vadd.f32 %v571, %v590
    %v605 = vadd.f32 %v572, %v590
    %v606 = vadd.f32 %v573, %v595
    %v607 = vadd.f32 %v574, %v595
    %v608 = vadd.f32 %v575, %v600
    %v609 = vadd.f32 %v576, %v600
    %s610 = scalar_lea.vmem %s3, 32
    %v611 = vld [vmem:[%s610] sm:$0xf]
    %v612 = vld [vmem:[%s610 + $0x4] sm:$0xf]
    %v613 = vld [vmem:[%s610 + $0x8] sm:$0xf]
    %v614 = vld [vmem:[%s610 + $0xc] sm:$0xf]
    %v615 = vmax.f32 %v602, 0.0
    %v616 = vmax.f32 %v603, 0.0
    %v617 = vmax.f32 %v604, 0.0
    %v618 = vmax.f32 %v605, 0.0
    %v619 = vmax.f32 %v606, 0.0
    %v620 = vmax.f32 %v607, 0.0
    %v621 = vmax.f32 %v608, 0.0
    %v622 = vmax.f32 %v609, 0.0
    %v623 = vpack.c.bf16 %v617, %v615
    %v624 = vpack.c.bf16 %v618, %v616
    %v625 = vpack.c.bf16 %v621, %v619
    %v626 = vpack.c.bf16 %v622, %v620
    %s627 = scalar_lea.vmem %s4, 64
    %v628 = vld [vmem:[%s627] sm:$0xff]
    %v629 = vld [vmem:[%s627 + $0x8] sm:$0xff]
    %v630 = vld [vmem:[%s627 + $0x10] sm:$0xff]
    %v631 = vld [vmem:[%s627 + $0x18] sm:$0xff]
    %633 = vset.pattern.permute.xlu0 0
    %634 = vperm.xlu0 %633, %v628
    %v635 = vpop.permute.xlu0 %634
    %638 = vset.pattern.permute.xlu0 0
    %639 = vperm.xlu0 %638, %v629
    %v640 = vpop.permute.xlu0 %639
    %643 = vset.pattern.permute.xlu0 0
    %644 = vperm.xlu0 %643, %v630
    %v645 = vpop.permute.xlu0 %644
    %648 = vset.pattern.permute.xlu0 0
    %649 = vperm.xlu0 %648, %v631
    %v650 = vpop.permute.xlu0 %649
    %v656 = vunpack.c.l.b16 %v611
    %v657 = vunpack.c.l.b16 %v612
    %v658 = vunpack.c.l.b16 %v613
    %v659 = vunpack.c.l.b16 %v614
    %v660 = vpack.c.b16 %v657, %v656
    %v661 = vpack.c.b16 %v659, %v658
    %v663 = vsel %vm92, %v660, 0
    %v666 = vsel %vm92, %v661, 0
    %668 = vmatprep.subr.bf16.mxu0 %v624
    %669 = vmatpush1.bf16.msra.mxu0 %v623
    %670 = vmatprep.subr.bf16.mxu0 %v626
    %671 = vmatpush1.bf16.msra.mxu0 %v625
    %672 = vmatprep.subr.bf16.mxu0 0
    %673 = vmatpush1.bf16.msra.mxu0 0
    %674 = vmatprep.subr.bf16.mxu0 0
    %675 = vmatpush1.bf16.msra.mxu0 0
    %676 = vmatprep.subr.bf16.mxu0 0
    %677 = vmatpush1.bf16.msra.mxu0 0
    %678 = vmatprep.subr.bf16.mxu0 0
    %679 = vmatpush1.bf16.msra.mxu0 0
    %680 = vmatprep.subr.bf16.mxu0 0
    %681 = vmatpush1.bf16.msra.mxu0 0
    %682 = vmatprep.subr.bf16.mxu0 0
    %683 = vmatpush1.bf16.msra.mxu0 0
    %684 = vmatprep.subr.bf16.mxu0 0
    %685 = vmatpush1.bf16.msra.mxu0 0
    %686 = vmatprep.subr.bf16.mxu0 0
    %687 = vmatpush1.bf16.msra.mxu0 0
    %688 = vmatprep.subr.bf16.mxu0 0
    %689 = vmatpush1.bf16.msra.mxu0 0
    %690 = vmatprep.subr.bf16.mxu0 0
    %691 = vmatpush1.bf16.msra.mxu0 0
    %692 = vmatprep.subr.bf16.mxu0 0
    %693 = vmatpush1.bf16.msra.mxu0 0
    %694 = vmatprep.subr.bf16.mxu0 0
    %695 = vmatpush1.bf16.msra.mxu0 0
    %696 = vmatprep.subr.bf16.mxu0 0
    %697 = vmatpush1.bf16.msra.mxu0 0
    %698 = vmatprep.subr.bf16.mxu0 0
    %699 = vmatpush1.bf16.msra.mxu0 0
    %700 = vmatprep.mubr.bf16.mxu0 0
    %701 = vmatmul.mubr.bf16.gmra.mrb[0].mxu0 %v663
    %v702 = vpop.f32.mrb[0].mxu0
    %v703 = vadd.f32 %v635, %v702
    %v704 = vpop.f32.mrb[0].mxu0
    %v705 = vadd.f32 %v635, %v704
    %v706 = vpop.f32.mrb[0].mxu0
    %v707 = vadd.f32 %v640, %v706
    %v708 = vpop.f32.mrb[0].mxu0
    %v709 = vadd.f32 %v640, %v708
    %710 = vmatprep.mubr.bf16.mxu0 0
    %711 = vmatmul.mubr.bf16.gmra.mrb[0].mxu0 %v666
    %v712 = vpop.f32.mrb[0].mxu0
    %v713 = vadd.f32 %v645, %v712
    %v714 = vpop.f32.mrb[0].mxu0
    %v715 = vadd.f32 %v645, %v714
    %v716 = vpop.f32.mrb[0].mxu0
    %v717 = vadd.f32 %v650, %v716
    %v718 = vpop.f32.mrb[0].mxu0
    %v719 = vadd.f32 %v650, %v718
    %720 = vdwg.mxu0
    %s721 = scalar_lea.vmem %s3, 48
    %v722 = vld [vmem:[%s721] sm:$0xf]
    %v723 = vld [vmem:[%s721 + $0x4] sm:$0xf]
    %v724 = vld [vmem:[%s721 + $0x8] sm:$0xf]
    %v725 = vld [vmem:[%s721 + $0xc] sm:$0xf]
    %v726 = vmax.f32 %v703, 0.0
    %v727 = vmax.f32 %v705, 0.0
    %v728 = vmax.f32 %v707, 0.0
    %v729 = vmax.f32 %v709, 0.0
    %v730 = vmax.f32 %v713, 0.0
    %v731 = vmax.f32 %v715, 0.0
    %v732 = vmax.f32 %v717, 0.0
    %v733 = vmax.f32 %v719, 0.0
    %v734 = vpack.c.bf16 %v728, %v726
    %v735 = vpack.c.bf16 %v729, %v727
    %v736 = vpack.c.bf16 %v732, %v730
    %v737 = vpack.c.bf16 %v733, %v731
    %s738 = scalar_lea.vmem %s4, 96
    %v739 = vld [vmem:[%s738] sm:$0xff]
    %v740 = vld [vmem:[%s738 + $0x8] sm:$0xff]
    %v741 = vld [vmem:[%s738 + $0x10] sm:$0xff]
    %v742 = vld [vmem:[%s738 + $0x18] sm:$0xff]
    %744 = vset.pattern.permute.xlu0 0
    %745 = vperm.xlu0 %744, %v739
    %v746 = vpop.permute.xlu0 %745
    %749 = vset.pattern.permute.xlu0 0
    %750 = vperm.xlu0 %749, %v740
    %v751 = vpop.permute.xlu0 %750
    %754 = vset.pattern.permute.xlu0 0
    %755 = vperm.xlu0 %754, %v741
    %v756 = vpop.permute.xlu0 %755
    %759 = vset.pattern.permute.xlu0 0
    %760 = vperm.xlu0 %759, %v742
    %v761 = vpop.permute.xlu0 %760
    %v767 = vunpack.c.l.b16 %v722
    %v768 = vunpack.c.l.b16 %v723
    %v769 = vunpack.c.l.b16 %v724
    %v770 = vunpack.c.l.b16 %v725
    %v771 = vpack.c.b16 %v768, %v767
    %v772 = vpack.c.b16 %v770, %v769
    %v774 = vsel %vm92, %v771, 0
    %v777 = vsel %vm92, %v772, 0
    %779 = vmatprep.subr.bf16.mxu0 %v735
    %780 = vmatpush1.bf16.msra.mxu0 %v734
    %781 = vmatprep.subr.bf16.mxu0 %v737
    %782 = vmatpush1.bf16.msra.mxu0 %v736
    %783 = vmatprep.subr.bf16.mxu0 0
    %784 = vmatpush1.bf16.msra.mxu0 0
    %785 = vmatprep.subr.bf16.mxu0 0
    %786 = vmatpush1.bf16.msra.mxu0 0
    %787 = vmatprep.subr.bf16.mxu0 0
    %788 = vmatpush1.bf16.msra.mxu0 0
    %789 = vmatprep.subr.bf16.mxu0 0
    %790 = vmatpush1.bf16.msra.mxu0 0
    %791 = vmatprep.subr.bf16.mxu0 0
    %792 = vmatpush1.bf16.msra.mxu0 0
    %793 = vmatprep.subr.bf16.mxu0 0
    %794 = vmatpush1.bf16.msra.mxu0 0
    %795 = vmatprep.subr.bf16.mxu0 0
    %796 = vmatpush1.bf16.msra.mxu0 0
    %797 = vmatprep.subr.bf16.mxu0 0
    %798 = vmatpush1.bf16.msra.mxu0 0
    %799 = vmatprep.subr.bf16.mxu0 0
    %800 = vmatpush1.bf16.msra.mxu0 0
    %801 = vmatprep.subr.bf16.mxu0 0
    %802 = vmatpush1.bf16.msra.mxu0 0
    %803 = vmatprep.subr.bf16.mxu0 0
    %804 = vmatpush1.bf16.msra.mxu0 0
    %805 = vmatprep.subr.bf16.mxu0 0
    %806 = vmatpush1.bf16.msra.mxu0 0
    %807 = vmatprep.subr.bf16.mxu0 0
    %808 = vmatpush1.bf16.msra.mxu0 0
    %809 = vmatprep.subr.bf16.mxu0 0
    %810 = vmatpush1.bf16.msra.mxu0 0
    %811 = vmatprep.mubr.bf16.mxu0 0
    %812 = vmatmul.mubr.bf16.gmra.mrb[0].mxu0 %v774
    %v813 = vpop.f32.mrb[0].mxu0
    %v814 = vadd.f32 %v746, %v813
    %v815 = vpop.f32.mrb[0].mxu0
    %v816 = vadd.f32 %v746, %v815
    %v817 = vpop.f32.mrb[0].mxu0
    %v818 = vadd.f32 %v751, %v817
    %v819 = vpop.f32.mrb[0].mxu0
    %v820 = vadd.f32 %v751, %v819
    %821 = vmatprep.mubr.bf16.mxu0 0
    %822 = vmatmul.mubr.bf16.gmra.mrb[0].mxu0 %v777
    %v823 = vpop.f32.mrb[0].mxu0
    %v824 = vadd.f32 %v756, %v823
    %v825 = vpop.f32.mrb[0].mxu0
    %v826 = vadd.f32 %v756, %v825
    %v827 = vpop.f32.mrb[0].mxu0
    %v828 = vadd.f32 %v761, %v827
    %v829 = vpop.f32.mrb[0].mxu0
    %v830 = vadd.f32 %v761, %v829
    %831 = vdwg.mxu0
    %v832 = vadd.f32 %v602, %v814
    %v833 = vadd.f32 %v603, %v816
    %v834 = vadd.f32 %v604, %v818
    %v835 = vadd.f32 %v605, %v820
    %v836 = vadd.f32 %v606, %v824
    %v837 = vadd.f32 %v607, %v826
    %v838 = vadd.f32 %v608, %v828
    %v839 = vadd.f32 %v609, %v830
    %s840 = scalar_lea.vmem %s1, 48
    %v841 = vld [vmem:[%s840] sm:$0xf]
    %v842 = vld [vmem:[%s840 + $0x4] sm:$0xf]
    %v843 = vld [vmem:[%s840 + $0x8] sm:$0xf]
    %v844 = vld [vmem:[%s840 + $0xc] sm:$0xf]
    %v849 = vunpack.c.l.b16 %v841
    %v850 = vunpack.c.l.b16 %v842
    %v851 = vunpack.c.l.b16 %v843
    %v852 = vunpack.c.l.b16 %v844
    %v853 = vpack.c.b16 %v850, %v849
    %v854 = vpack.c.b16 %v852, %v851
    %v856 = vsel %vm92, %v853, 0
    %v859 = vsel %vm92, %v854, 0
    %861 = vmatprep.subr.bf16.mxu0 %v85
    %862 = vmatpush1.bf16.msra.mxu0 %v84
    %863 = vmatprep.subr.bf16.mxu0 %v87
    %864 = vmatpush1.bf16.msra.mxu0 %v86
    %865 = vmatprep.subr.bf16.mxu0 0
    %866 = vmatpush1.bf16.msra.mxu0 0
    %867 = vmatprep.subr.bf16.mxu0 0
    %868 = vmatpush1.bf16.msra.mxu0 0
    %869 = vmatprep.subr.bf16.mxu0 0
    %870 = vmatpush1.bf16.msra.mxu0 0
    %871 = vmatprep.subr.bf16.mxu0 0
    %872 = vmatpush1.bf16.msra.mxu0 0
    %873 = vmatprep.subr.bf16.mxu0 0
    %874 = vmatpush1.bf16.msra.mxu0 0
    %875 = vmatprep.subr.bf16.mxu0 0
    %876 = vmatpush1.bf16.msra.mxu0 0
    %877 = vmatprep.subr.bf16.mxu0 0
    %878 = vmatpush1.bf16.msra.mxu0 0
    %879 = vmatprep.subr.bf16.mxu0 0
    %880 = vmatpush1.bf16.msra.mxu0 0
    %881 = vmatprep.subr.bf16.mxu0 0
    %882 = vmatpush1.bf16.msra.mxu0 0
    %883 = vmatprep.subr.bf16.mxu0 0
    %884 = vmatpush1.bf16.msra.mxu0 0
    %885 = vmatprep.subr.bf16.mxu0 0
    %886 = vmatpush1.bf16.msra.mxu0 0
    %887 = vmatprep.subr.bf16.mxu0 0
    %888 = vmatpush1.bf16.msra.mxu0 0
    %889 = vmatprep.subr.bf16.mxu0 0
    %890 = vmatpush1.bf16.msra.mxu0 0
    %891 = vmatprep.subr.bf16.mxu0 0
    %892 = vmatpush1.bf16.msra.mxu0 0
    %893 = vmatprep.mubr.bf16.mxu0 0
    %894 = vmatmul.mubr.bf16.gmra.mrb[0].mxu0 %v856
    %v895 = vpop.f32.mrb[0].mxu0
    %v896 = vadd.f32 0.0, %v895
    %v897 = vpop.f32.mrb[0].mxu0
    %v898 = vadd.f32 0.0, %v897
    %v899 = vpop.f32.mrb[0].mxu0
    %v900 = vadd.f32 0.0, %v899
    %v901 = vpop.f32.mrb[0].mxu0
    %v902 = vadd.f32 0.0, %v901
    %903 = vmatprep.mubr.bf16.mxu0 0
    %904 = vmatmul.mubr.bf16.gmra.mrb[0].mxu0 %v859
    %v905 = vpop.f32.mrb[0].mxu0
    %v906 = vadd.f32 0.0, %v905
    %v907 = vpop.f32.mrb[0].mxu0
    %v908 = vadd.f32 0.0, %v907
    %v909 = vpop.f32.mrb[0].mxu0
    %v910 = vadd.f32 0.0, %v909
    %v911 = vpop.f32.mrb[0].mxu0
    %v912 = vadd.f32 0.0, %v911
    %913 = vdwg.mxu0
    %v914 = vadd.f32 %v832, %v896
    %v915 = vadd.f32 %v833, %v898
    %v916 = vadd.f32 %v834, %v900
    %v917 = vadd.f32 %v835, %v902
    %v918 = vadd.f32 %v836, %v906
    %v919 = vadd.f32 %v837, %v908
    %v920 = vadd.f32 %v838, %v910
    %v921 = vadd.f32 %v839, %v912
    %s922 = scalar_lea.vmem %s2, 96
    %v923 = vld [vmem:[%s922] sm:$0xff]
    %v924 = vld [vmem:[%s922 + $0x8] sm:$0xff]
    %v925 = vld [vmem:[%s922 + $0x10] sm:$0xff]
    %v926 = vld [vmem:[%s922 + $0x18] sm:$0xff]
    %928 = vset.pattern.permute.xlu0 0
    %929 = vperm.xlu0 %928, %v923
    %v930 = vpop.permute.xlu0 %929
    %933 = vset.pattern.permute.xlu0 0
    %934 = vperm.xlu0 %933, %v924
    %v935 = vpop.permute.xlu0 %934
    %938 = vset.pattern.permute.xlu0 0
    %939 = vperm.xlu0 %938, %v925
    %v940 = vpop.permute.xlu0 %939
    %943 = vset.pattern.permute.xlu0 0
    %944 = vperm.xlu0 %943, %v926
    %v945 = vpop.permute.xlu0 %944
    %v947 = vadd.f32 %v914, %v930
    %v948 = vadd.f32 %v915, %v930
    %v949 = vadd.f32 %v916, %v935
    %v950 = vadd.f32 %v917, %v935
    %v951 = vadd.f32 %v918, %v940
    %v952 = vadd.f32 %v919, %v940
    %v953 = vadd.f32 %v920, %v945
    %v954 = vadd.f32 %v921, %v945
    %s955 = scalar_lea.vmem %s3, 64
    %v956 = vld [vmem:[%s955] sm:$0xf]
    %v957 = vld [vmem:[%s955 + $0x4] sm:$0xf]
    %v958 = vld [vmem:[%s955 + $0x8] sm:$0xf]
    %v959 = vld [vmem:[%s955 + $0xc] sm:$0xf]
    %v960 = vmax.f32 %v947, 0.0
    %v961 = vmax.f32 %v948, 0.0
    %v962 = vmax.f32 %v949, 0.0
    %v963 = vmax.f32 %v950, 0.0
    %v964 = vmax.f32 %v951, 0.0
    %v965 = vmax.f32 %v952, 0.0
    %v966 = vmax.f32 %v953, 0.0
    %v967 = vmax.f32 %v954, 0.0
    %v968 = vpack.c.bf16 %v962, %v960
    %v969 = vpack.c.bf16 %v963, %v961
    %v970 = vpack.c.bf16 %v966, %v964
    %v971 = vpack.c.bf16 %v967, %v965
    %s972 = scalar_lea.vmem %s4, 128
    %v973 = vld [vmem:[%s972] sm:$0xff]
    %v974 = vld [vmem:[%s972 + $0x8] sm:$0xff]
    %v975 = vld [vmem:[%s972 + $0x10] sm:$0xff]
    %v976 = vld [vmem:[%s972 + $0x18] sm:$0xff]
    %978 = vset.pattern.permute.xlu0 0
    %979 = vperm.xlu0 %978, %v973
    %v980 = vpop.permute.xlu0 %979
    %983 = vset.pattern.permute.xlu0 0
    %984 = vperm.xlu0 %983, %v974
    %v985 = vpop.permute.xlu0 %984
    %988 = vset.pattern.permute.xlu0 0
    %989 = vperm.xlu0 %988, %v975
    %v990 = vpop.permute.xlu0 %989
    %993 = vset.pattern.permute.xlu0 0
    %994 = vperm.xlu0 %993, %v976
    %v995 = vpop.permute.xlu0 %994
    %v1001 = vunpack.c.l.b16 %v956
    %v1002 = vunpack.c.l.b16 %v957
    %v1003 = vunpack.c.l.b16 %v958
    %v1004 = vunpack.c.l.b16 %v959
    %v1005 = vpack.c.b16 %v1002, %v1001
    %v1006 = vpack.c.b16 %v1004, %v1003
    %v1008 = vsel %vm92, %v1005, 0
    %v1011 = vsel %vm92, %v1006, 0
    %1013 = vmatprep.subr.bf16.mxu0 %v969
    %1014 = vmatpush1.bf16.msra.mxu0 %v968
    %1015 = vmatprep.subr.bf16.mxu0 %v971
    %1016 = vmatpush1.bf16.msra.mxu0 %v970
    %1017 = vmatprep.subr.bf16.mxu0 0
    %1018 = vmatpush1.bf16.msra.mxu0 0
    %1019 = vmatprep.subr.bf16.mxu0 0
    %1020 = vmatpush1.bf16.msra.mxu0 0
    %1021 = vmatprep.subr.bf16.mxu0 0
    %1022 = vmatpush1.bf16.msra.mxu0 0
    %1023 = vmatprep.subr.bf16.mxu0 0
    %1024 = vmatpush1.bf16.msra.mxu0 0
    %1025 = vmatprep.subr.bf16.mxu0 0
    %1026 = vmatpush1.bf16.msra.mxu0 0
    %1027 = vmatprep.subr.bf16.mxu0 0
    %1028 = vmatpush1.bf16.msra.mxu0 0
    %1029 = vmatprep.subr.bf16.mxu0 0
    %1030 = vmatpush1.bf16.msra.mxu0 0
    %1031 = vmatprep.subr.bf16.mxu0 0
    %1032 = vmatpush1.bf16.msra.mxu0 0
    %1033 = vmatprep.subr.bf16.mxu0 0
    %1034 = vmatpush1.bf16.msra.mxu0 0
    %1035 = vmatprep.subr.bf16.mxu0 0
    %1036 = vmatpush1.bf16.msra.mxu0 0
    %1037 = vmatprep.subr.bf16.mxu0 0
    %1038 = vmatpush1.bf16.msra.mxu0 0
    %1039 = vmatprep.subr.bf16.mxu0 0
    %1040 = vmatpush1.bf16.msra.mxu0 0
    %1041 = vmatprep.subr.bf16.mxu0 0
    %1042 = vmatpush1.bf16.msra.mxu0 0
    %1043 = vmatprep.subr.bf16.mxu0 0
    %1044 = vmatpush1.bf16.msra.mxu0 0
    %1045 = vmatprep.mubr.bf16.mxu0 0
    %1046 = vmatmul.mubr.bf16.gmra.mrb[0].mxu0 %v1008
    %v1047 = vpop.f32.mrb[0].mxu0
    %v1048 = vadd.f32 %v980, %v1047
    %v1049 = vpop.f32.mrb[0].mxu0
    %v1050 = vadd.f32 %v980, %v1049
    %v1051 = vpop.f32.mrb[0].mxu0
    %v1052 = vadd.f32 %v985, %v1051
    %v1053 = vpop.f32.mrb[0].mxu0
    %v1054 = vadd.f32 %v985, %v1053
    %1055 = vmatprep.mubr.bf16.mxu0 0
    %1056 = vmatmul.mubr.bf16.gmra.mrb[0].mxu0 %v1011
    %v1057 = vpop.f32.mrb[0].mxu0
    %v1058 = vadd.f32 %v990, %v1057
    %v1059 = vpop.f32.mrb[0].mxu0
    %v1060 = vadd.f32 %v990, %v1059
    %v1061 = vpop.f32.mrb[0].mxu0
    %v1062 = vadd.f32 %v995, %v1061
    %v1063 = vpop.f32.mrb[0].mxu0
    %v1064 = vadd.f32 %v995, %v1063
    %1065 = vdwg.mxu0
    %s1066 = scalar_lea.vmem %s3, 80
    %v1067 = vld [vmem:[%s1066] sm:$0xf]
    %v1068 = vld [vmem:[%s1066 + $0x4] sm:$0xf]
    %v1069 = vld [vmem:[%s1066 + $0x8] sm:$0xf]
    %v1070 = vld [vmem:[%s1066 + $0xc] sm:$0xf]
    %v1071 = vmax.f32 %v1048, 0.0
    %v1072 = vmax.f32 %v1050, 0.0
    %v1073 = vmax.f32 %v1052, 0.0
    %v1074 = vmax.f32 %v1054, 0.0
    %v1075 = vmax.f32 %v1058, 0.0
    %v1076 = vmax.f32 %v1060, 0.0
    %v1077 = vmax.f32 %v1062, 0.0
    %v1078 = vmax.f32 %v1064, 0.0
    %v1079 = vpack.c.bf16 %v1073, %v1071
    %v1080 = vpack.c.bf16 %v1074, %v1072
    %v1081 = vpack.c.bf16 %v1077, %v1075
    %v1082 = vpack.c.bf16 %v1078, %v1076
    %s1083 = scalar_lea.vmem %s4, 160
    %v1084 = vld [vmem:[%s1083] sm:$0xff]
    %v1085 = vld [vmem:[%s1083 + $0x8] sm:$0xff]
    %v1086 = vld [vmem:[%s1083 + $0x10] sm:$0xff]
    %v1087 = vld [vmem:[%s1083 + $0x18] sm:$0xff]
    %1089 = vset.pattern.permute.xlu0 0
    %1090 = vperm.xlu0 %1089, %v1084
    %v1091 = vpop.permute.xlu0 %1090
    %1094 = vset.pattern.permute.xlu0 0
    %1095 = vperm.xlu0 %1094, %v1085
    %v1096 = vpop.permute.xlu0 %1095
    %1099 = vset.pattern.permute.xlu0 0
    %1100 = vperm.xlu0 %1099, %v1086
    %v1101 = vpop.permute.xlu0 %1100
    %1104 = vset.pattern.permute.xlu0 0
    %1105 = vperm.xlu0 %1104, %v1087
    %v1106 = vpop.permute.xlu0 %1105
    %v1112 = vunpack.c.l.b16 %v1067
    %v1113 = vunpack.c.l.b16 %v1068
    %v1114 = vunpack.c.l.b16 %v1069
    %v1115 = vunpack.c.l.b16 %v1070
    %v1116 = vpack.c.b16 %v1113, %v1112
    %v1117 = vpack.c.b16 %v1115, %v1114
    %v1119 = vsel %vm92, %v1116, 0
    %v1122 = vsel %vm92, %v1117, 0
    %1124 = vmatprep.subr.bf16.mxu0 %v1080
    %1125 = vmatpush1.bf16.msra.mxu0 %v1079
    %1126 = vmatprep.subr.bf16.mxu0 %v1082
    %1127 = vmatpush1.bf16.msra.mxu0 %v1081
    %1128 = vmatprep.subr.bf16.mxu0 0
    %1129 = vmatpush1.bf16.msra.mxu0 0
    %1130 = vmatprep.subr.bf16.mxu0 0
    %1131 = vmatpush1.bf16.msra.mxu0 0
    %1132 = vmatprep.subr.bf16.mxu0 0
    %1133 = vmatpush1.bf16.msra.mxu0 0
    %1134 = vmatprep.subr.bf16.mxu0 0
    %1135 = vmatpush1.bf16.msra.mxu0 0
    %1136 = vmatprep.subr.bf16.mxu0 0
    %1137 = vmatpush1.bf16.msra.mxu0 0
    %1138 = vmatprep.subr.bf16.mxu0 0
    %1139 = vmatpush1.bf16.msra.mxu0 0
    %1140 = vmatprep.subr.bf16.mxu0 0
    %1141 = vmatpush1.bf16.msra.mxu0 0
    %1142 = vmatprep.subr.bf16.mxu0 0
    %1143 = vmatpush1.bf16.msra.mxu0 0
    %1144 = vmatprep.subr.bf16.mxu0 0
    %1145 = vmatpush1.bf16.msra.mxu0 0
    %1146 = vmatprep.subr.bf16.mxu0 0
    %1147 = vmatpush1.bf16.msra.mxu0 0
    %1148 = vmatprep.subr.bf16.mxu0 0
    %1149 = vmatpush1.bf16.msra.mxu0 0
    %1150 = vmatprep.subr.bf16.mxu0 0
    %1151 = vmatpush1.bf16.msra.mxu0 0
    %1152 = vmatprep.subr.bf16.mxu0 0
    %1153 = vmatpush1.bf16.msra.mxu0 0
    %1154 = vmatprep.subr.bf16.mxu0 0
    %1155 = vmatpush1.bf16.msra.mxu0 0
    %1156 = vmatprep.mubr.bf16.mxu0 0
    %1157 = vmatmul.mubr.bf16.gmra.mrb[0].mxu0 %v1119
    %v1158 = vpop.f32.mrb[0].mxu0
    %v1159 = vadd.f32 %v1091, %v1158
    %v1160 = vpop.f32.mrb[0].mxu0
    %v1161 = vadd.f32 %v1091, %v1160
    %v1162 = vpop.f32.mrb[0].mxu0
    %v1163 = vadd.f32 %v1096, %v1162
    %v1164 = vpop.f32.mrb[0].mxu0
    %v1165 = vadd.f32 %v1096, %v1164
    %1166 = vmatprep.mubr.bf16.mxu0 0
    %1167 = vmatmul.mubr.bf16.gmra.mrb[0].mxu0 %v1122
    %v1168 = vpop.f32.mrb[0].mxu0
    %v1169 = vadd.f32 %v1101, %v1168
    %v1170 = vpop.f32.mrb[0].mxu0
    %v1171 = vadd.f32 %v1101, %v1170
    %v1172 = vpop.f32.mrb[0].mxu0
    %v1173 = vadd.f32 %v1106, %v1172
    %v1174 = vpop.f32.mrb[0].mxu0
    %v1175 = vadd.f32 %v1106, %v1174
    %1176 = vdwg.mxu0
    %v1177 = vadd.f32 %v947, %v1159
    %v1178 = vadd.f32 %v948, %v1161
    %v1179 = vadd.f32 %v949, %v1163
    %v1180 = vadd.f32 %v950, %v1165
    %v1181 = vadd.f32 %v951, %v1169
    %v1182 = vadd.f32 %v952, %v1171
    %v1183 = vadd.f32 %v953, %v1173
    %v1184 = vadd.f32 %v954, %v1175
    %s1185 = scalar_lea.vmem %s1, 64
    %v1186 = vld [vmem:[%s1185] sm:$0xf]
    %v1187 = vld [vmem:[%s1185 + $0x4] sm:$0xf]
    %v1188 = vld [vmem:[%s1185 + $0x8] sm:$0xf]
    %v1189 = vld [vmem:[%s1185 + $0xc] sm:$0xf]
    %v1194 = vunpack.c.l.b16 %v1186
    %v1195 = vunpack.c.l.b16 %v1187
    %v1196 = vunpack.c.l.b16 %v1188
    %v1197 = vunpack.c.l.b16 %v1189
    %v1198 = vpack.c.b16 %v1195, %v1194
    %v1199 = vpack.c.b16 %v1197, %v1196
    %v1201 = vsel %vm92, %v1198, 0
    %v1204 = vsel %vm92, %v1199, 0
    %1206 = vmatprep.subr.bf16.mxu0 %v85
    %1207 = vmatpush1.bf16.msra.mxu0 %v84
    %1208 = vmatprep.subr.bf16.mxu0 %v87
    %1209 = vmatpush1.bf16.msra.mxu0 %v86
    %1210 = vmatprep.subr.bf16.mxu0 0
    %1211 = vmatpush1.bf16.msra.mxu0 0
    %1212 = vmatprep.subr.bf16.mxu0 0
    %1213 = vmatpush1.bf16.msra.mxu0 0
    %1214 = vmatprep.subr.bf16.mxu0 0
    %1215 = vmatpush1.bf16.msra.mxu0 0
    %1216 = vmatprep.subr.bf16.mxu0 0
    %1217 = vmatpush1.bf16.msra.mxu0 0
    %1218 = vmatprep.subr.bf16.mxu0 0
    %1219 = vmatpush1.bf16.msra.mxu0 0
    %1220 = vmatprep.subr.bf16.mxu0 0
    %1221 = vmatpush1.bf16.msra.mxu0 0
    %1222 = vmatprep.subr.bf16.mxu0 0
    %1223 = vmatpush1.bf16.msra.mxu0 0
    %1224 = vmatprep.subr.bf16.mxu0 0
    %1225 = vmatpush1.bf16.msra.mxu0 0
    %1226 = vmatprep.subr.bf16.mxu0 0
    %1227 = vmatpush1.bf16.msra.mxu0 0
    %1228 = vmatprep.subr.bf16.mxu0 0
    %1229 = vmatpush1.bf16.msra.mxu0 0
    %1230 = vmatprep.subr.bf16.mxu0 0
    %1231 = vmatpush1.bf16.msra.mxu0 0
    %1232 = vmatprep.subr.bf16.mxu0 0
    %1233 = vmatpush1.bf16.msra.mxu0 0
    %1234 = vmatprep.subr.bf16.mxu0 0
    %1235 = vmatpush1.bf16.msra.mxu0 0
    %1236 = vmatprep.subr.bf16.mxu0 0
    %1237 = vmatpush1.bf16.msra.mxu0 0
    %1238 = vmatprep.mubr.bf16.mxu0 0
    %1239 = vmatmul.mubr.bf16.gmra.mrb[0].mxu0 %v1201
    %v1240 = vpop.f32.mrb[0].mxu0
    %v1241 = vadd.f32 0.0, %v1240
    %v1242 = vpop.f32.mrb[0].mxu0
    %v1243 = vadd.f32 0.0, %v1242
    %v1244 = vpop.f32.mrb[0].mxu0
    %v1245 = vadd.f32 0.0, %v1244
    %v1246 = vpop.f32.mrb[0].mxu0
    %v1247 = vadd.f32 0.0, %v1246
    %1248 = vmatprep.mubr.bf16.mxu0 0
    %1249 = vmatmul.mubr.bf16.gmra.mrb[0].mxu0 %v1204
    %v1250 = vpop.f32.mrb[0].mxu0
    %v1251 = vadd.f32 0.0, %v1250
    %v1252 = vpop.f32.mrb[0].mxu0
    %v1253 = vadd.f32 0.0, %v1252
    %v1254 = vpop.f32.mrb[0].mxu0
    %v1255 = vadd.f32 0.0, %v1254
    %v1256 = vpop.f32.mrb[0].mxu0
    %v1257 = vadd.f32 0.0, %v1256
    %1258 = vdwg.mxu0
    %v1259 = vadd.f32 %v1177, %v1241
    %v1260 = vadd.f32 %v1178, %v1243
    %v1261 = vadd.f32 %v1179, %v1245
    %v1262 = vadd.f32 %v1180, %v1247
    %v1263 = vadd.f32 %v1181, %v1251
    %v1264 = vadd.f32 %v1182, %v1253
    %v1265 = vadd.f32 %v1183, %v1255
    %v1266 = vadd.f32 %v1184, %v1257
    %s1267 = scalar_lea.vmem %s2, 128
    %v1268 = vld [vmem:[%s1267] sm:$0xff]
    %v1269 = vld [vmem:[%s1267 + $0x8] sm:$0xff]
    %v1270 = vld [vmem:[%s1267 + $0x10] sm:$0xff]
    %v1271 = vld [vmem:[%s1267 + $0x18] sm:$0xff]
    %1273 = vset.pattern.permute.xlu0 0
    %1274 = vperm.xlu0 %1273, %v1268
    %v1275 = vpop.permute.xlu0 %1274
    %1278 = vset.pattern.permute.xlu0 0
    %1279 = vperm.xlu0 %1278, %v1269
    %v1280 = vpop.permute.xlu0 %1279
    %1283 = vset.pattern.permute.xlu0 0
    %1284 = vperm.xlu0 %1283, %v1270
    %v1285 = vpop.permute.xlu0 %1284
    %1288 = vset.pattern.permute.xlu0 0
    %1289 = vperm.xlu0 %1288, %v1271
    %v1290 = vpop.permute.xlu0 %1289
    %v1292 = vadd.f32 %v1259, %v1275
    %v1293 = vadd.f32 %v1260, %v1275
    %v1294 = vadd.f32 %v1261, %v1280
    %v1295 = vadd.f32 %v1262, %v1280
    %v1296 = vadd.f32 %v1263, %v1285
    %v1297 = vadd.f32 %v1264, %v1285
    %v1298 = vadd.f32 %v1265, %v1290
    %v1299 = vadd.f32 %v1266, %v1290
    %s1300 = scalar_lea.vmem %s3, 96
    %v1301 = vld [vmem:[%s1300] sm:$0xf]
    %v1302 = vld [vmem:[%s1300 + $0x4] sm:$0xf]
    %v1303 = vld [vmem:[%s1300 + $0x8] sm:$0xf]
    %v1304 = vld [vmem:[%s1300 + $0xc] sm:$0xf]
    %v1305 = vmax.f32 %v1292, 0.0
    %v1306 = vmax.f32 %v1293, 0.0
    %v1307 = vmax.f32 %v1294, 0.0
    %v1308 = vmax.f32 %v1295, 0.0
    %v1309 = vmax.f32 %v1296, 0.0
    %v1310 = vmax.f32 %v1297, 0.0
    %v1311 = vmax.f32 %v1298, 0.0
    %v1312 = vmax.f32 %v1299, 0.0
    %v1313 = vpack.c.bf16 %v1307, %v1305
    %v1314 = vpack.c.bf16 %v1308, %v1306
    %v1315 = vpack.c.bf16 %v1311, %v1309
    %v1316 = vpack.c.bf16 %v1312, %v1310
    %s1317 = scalar_lea.vmem %s4, 192
    %v1318 = vld [vmem:[%s1317] sm:$0xff]
    %v1319 = vld [vmem:[%s1317 + $0x8] sm:$0xff]
    %v1320 = vld [vmem:[%s1317 + $0x10] sm:$0xff]
    %v1321 = vld [vmem:[%s1317 + $0x18] sm:$0xff]
    %1323 = vset.pattern.permute.xlu0 0
    %1324 = vperm.xlu0 %1323, %v1318
    %v1325 = vpop.permute.xlu0 %1324
    %1328 = vset.pattern.permute.xlu0 0
    %1329 = vperm.xlu0 %1328, %v1319
    %v1330 = vpop.permute.xlu0 %1329
    %1333 = vset.pattern.permute.xlu0 0
    %1334 = vperm.xlu0 %1333, %v1320
    %v1335 = vpop.permute.xlu0 %1334
    %1338 = vset.pattern.permute.xlu0 0
    %1339 = vperm.xlu0 %1338, %v1321
    %v1340 = vpop.permute.xlu0 %1339
    %v1346 = vunpack.c.l.b16 %v1301
    %v1347 = vunpack.c.l.b16 %v1302
    %v1348 = vunpack.c.l.b16 %v1303
    %v1349 = vunpack.c.l.b16 %v1304
    %v1350 = vpack.c.b16 %v1347, %v1346
    %v1351 = vpack.c.b16 %v1349, %v1348
    %v1353 = vsel %vm92, %v1350, 0
    %v1356 = vsel %vm92, %v1351, 0
    %1358 = vmatprep.subr.bf16.mxu0 %v1314
    %1359 = vmatpush1.bf16.msra.mxu0 %v1313
    %1360 = vmatprep.subr.bf16.mxu0 %v1316
    %1361 = vmatpush1.bf16.msra.mxu0 %v1315
    %1362 = vmatprep.subr.bf16.mxu0 0
    %1363 = vmatpush1.bf16.msra.mxu0 0
    %1364 = vmatprep.subr.bf16.mxu0 0
    %1365 = vmatpush1.bf16.msra.mxu0 0
    %1366 = vmatprep.subr.bf16.mxu0 0
    %1367 = vmatpush1.bf16.msra.mxu0 0
    %1368 = vmatprep.subr.bf16.mxu0 0
    %1369 = vmatpush1.bf16.msra.mxu0 0
    %1370 = vmatprep.subr.bf16.mxu0 0
    %1371 = vmatpush1.bf16.msra.mxu0 0
    %1372 = vmatprep.subr.bf16.mxu0 0
    %1373 = vmatpush1.bf16.msra.mxu0 0
    %1374 = vmatprep.subr.bf16.mxu0 0
    %1375 = vmatpush1.bf16.msra.mxu0 0
    %1376 = vmatprep.subr.bf16.mxu0 0
    %1377 = vmatpush1.bf16.msra.mxu0 0
    %1378 = vmatprep.subr.bf16.mxu0 0
    %1379 = vmatpush1.bf16.msra.mxu0 0
    %1380 = vmatprep.subr.bf16.mxu0 0
    %1381 = vmatpush1.bf16.msra.mxu0 0
    %1382 = vmatprep.subr.bf16.mxu0 0
    %1383 = vmatpush1.bf16.msra.mxu0 0
    %1384 = vmatprep.subr.bf16.mxu0 0
    %1385 = vmatpush1.bf16.msra.mxu0 0
    %1386 = vmatprep.subr.bf16.mxu0 0
    %1387 = vmatpush1.bf16.msra.mxu0 0
    %1388 = vmatprep.subr.bf16.mxu0 0
    %1389 = vmatpush1.bf16.msra.mxu0 0
    %1390 = vmatprep.mubr.bf16.mxu0 0
    %1391 = vmatmul.mubr.bf16.gmra.mrb[0].mxu0 %v1353
    %v1392 = vpop.f32.mrb[0].mxu0
    %v1393 = vadd.f32 %v1325, %v1392
    %v1394 = vpop.f32.mrb[0].mxu0
    %v1395 = vadd.f32 %v1325, %v1394
    %v1396 = vpop.f32.mrb[0].mxu0
    %v1397 = vadd.f32 %v1330, %v1396
    %v1398 = vpop.f32.mrb[0].mxu0
    %v1399 = vadd.f32 %v1330, %v1398
    %1400 = vmatprep.mubr.bf16.mxu0 0
    %1401 = vmatmul.mubr.bf16.gmra.mrb[0].mxu0 %v1356
    %v1402 = vpop.f32.mrb[0].mxu0
    %v1403 = vadd.f32 %v1335, %v1402
    %v1404 = vpop.f32.mrb[0].mxu0
    %v1405 = vadd.f32 %v1335, %v1404
    %v1406 = vpop.f32.mrb[0].mxu0
    %v1407 = vadd.f32 %v1340, %v1406
    %v1408 = vpop.f32.mrb[0].mxu0
    %v1409 = vadd.f32 %v1340, %v1408
    %1410 = vdwg.mxu0
    %s1411 = scalar_lea.vmem %s3, 112
    %v1412 = vld [vmem:[%s1411] sm:$0xf]
    %v1413 = vld [vmem:[%s1411 + $0x4] sm:$0xf]
    %v1414 = vld [vmem:[%s1411 + $0x8] sm:$0xf]
    %v1415 = vld [vmem:[%s1411 + $0xc] sm:$0xf]
    %v1416 = vmax.f32 %v1393, 0.0
    %v1417 = vmax.f32 %v1395, 0.0
    %v1418 = vmax.f32 %v1397, 0.0
    %v1419 = vmax.f32 %v1399, 0.0
    %v1420 = vmax.f32 %v1403, 0.0
    %v1421 = vmax.f32 %v1405, 0.0
    %v1422 = vmax.f32 %v1407, 0.0
    %v1423 = vmax.f32 %v1409, 0.0
    %v1424 = vpack.c.bf16 %v1418, %v1416
    %v1425 = vpack.c.bf16 %v1419, %v1417
    %v1426 = vpack.c.bf16 %v1422, %v1420
    %v1427 = vpack.c.bf16 %v1423, %v1421
    %s1428 = scalar_lea.vmem %s4, 224
    %v1429 = vld [vmem:[%s1428] sm:$0xff]
    %v1430 = vld [vmem:[%s1428 + $0x8] sm:$0xff]
    %v1431 = vld [vmem:[%s1428 + $0x10] sm:$0xff]
    %v1432 = vld [vmem:[%s1428 + $0x18] sm:$0xff]
    %1434 = vset.pattern.permute.xlu0 0
    %1435 = vperm.xlu0 %1434, %v1429
    %v1436 = vpop.permute.xlu0 %1435
    %1439 = vset.pattern.permute.xlu0 0
    %1440 = vperm.xlu0 %1439, %v1430
    %v1441 = vpop.permute.xlu0 %1440
    %1444 = vset.pattern.permute.xlu0 0
    %1445 = vperm.xlu0 %1444, %v1431
    %v1446 = vpop.permute.xlu0 %1445
    %1449 = vset.pattern.permute.xlu0 0
    %1450 = vperm.xlu0 %1449, %v1432
    %v1451 = vpop.permute.xlu0 %1450
    %v1457 = vunpack.c.l.b16 %v1412
    %v1458 = vunpack.c.l.b16 %v1413
    %v1459 = vunpack.c.l.b16 %v1414
    %v1460 = vunpack.c.l.b16 %v1415
    %v1461 = vpack.c.b16 %v1458, %v1457
    %v1462 = vpack.c.b16 %v1460, %v1459
    %v1464 = vsel %vm92, %v1461, 0
    %v1467 = vsel %vm92, %v1462, 0
    %1469 = vmatprep.subr.bf16.mxu0 %v1425
    %1470 = vmatpush1.bf16.msra.mxu0 %v1424
    %1471 = vmatprep.subr.bf16.mxu0 %v1427
    %1472 = vmatpush1.bf16.msra.mxu0 %v1426
    %1473 = vmatprep.subr.bf16.mxu0 0
    %1474 = vmatpush1.bf16.msra.mxu0 0
    %1475 = vmatprep.subr.bf16.mxu0 0
    %1476 = vmatpush1.bf16.msra.mxu0 0
    %1477 = vmatprep.subr.bf16.mxu0 0
    %1478 = vmatpush1.bf16.msra.mxu0 0
    %1479 = vmatprep.subr.bf16.mxu0 0
    %1480 = vmatpush1.bf16.msra.mxu0 0
    %1481 = vmatprep.subr.bf16.mxu0 0
    %1482 = vmatpush1.bf16.msra.mxu0 0
    %1483 = vmatprep.subr.bf16.mxu0 0
    %1484 = vmatpush1.bf16.msra.mxu0 0
    %1485 = vmatprep.subr.bf16.mxu0 0
    %1486 = vmatpush1.bf16.msra.mxu0 0
    %1487 = vmatprep.subr.bf16.mxu0 0
    %1488 = vmatpush1.bf16.msra.mxu0 0
    %1489 = vmatprep.subr.bf16.mxu0 0
    %1490 = vmatpush1.bf16.msra.mxu0 0
    %1491 = vmatprep.subr.bf16.mxu0 0
    %1492 = vmatpush1.bf16.msra.mxu0 0
    %1493 = vmatprep.subr.bf16.mxu0 0
    %1494 = vmatpush1.bf16.msra.mxu0 0
    %1495 = vmatprep.subr.bf16.mxu0 0
    %1496 = vmatpush1.bf16.msra.mxu0 0
    %1497 = vmatprep.subr.bf16.mxu0 0
    %1498 = vmatpush1.bf16.msra.mxu0 0
    %1499 = vmatprep.subr.bf16.mxu0 0
    %1500 = vmatpush1.bf16.msra.mxu0 0
    %1501 = vmatprep.mubr.bf16.mxu0 0
    %1502 = vmatmul.mubr.bf16.gmra.mrb[0].mxu0 %v1464
    %v1503 = vpop.f32.mrb[0].mxu0
    %v1504 = vadd.f32 %v1436, %v1503
    %v1505 = vpop.f32.mrb[0].mxu0
    %v1506 = vadd.f32 %v1436, %v1505
    %v1507 = vpop.f32.mrb[0].mxu0
    %v1508 = vadd.f32 %v1441, %v1507
    %v1509 = vpop.f32.mrb[0].mxu0
    %v1510 = vadd.f32 %v1441, %v1509
    %1511 = vmatprep.mubr.bf16.mxu0 0
    %1512 = vmatmul.mubr.bf16.gmra.mrb[0].mxu0 %v1467
    %v1513 = vpop.f32.mrb[0].mxu0
    %v1514 = vadd.f32 %v1446, %v1513
    %v1515 = vpop.f32.mrb[0].mxu0
    %v1516 = vadd.f32 %v1446, %v1515
    %v1517 = vpop.f32.mrb[0].mxu0
    %v1518 = vadd.f32 %v1451, %v1517
    %v1519 = vpop.f32.mrb[0].mxu0
    %v1520 = vadd.f32 %v1451, %v1519
    %1521 = vdwg.mxu0
    %v1522 = vadd.f32 %v1292, %v1504
    %v1523 = vadd.f32 %v1293, %v1506
    %v1524 = vadd.f32 %v1294, %v1508
    %v1525 = vadd.f32 %v1295, %v1510
    %v1526 = vadd.f32 %v1296, %v1514
    %v1527 = vadd.f32 %v1297, %v1516
    %v1528 = vadd.f32 %v1298, %v1518
    %v1529 = vadd.f32 %v1299, %v1520
    %s1530 = scalar_lea.vmem %s1, 80
    %v1531 = vld [vmem:[%s1530] sm:$0xf]
    %v1532 = vld [vmem:[%s1530 + $0x4] sm:$0xf]
    %v1533 = vld [vmem:[%s1530 + $0x8] sm:$0xf]
    %v1534 = vld [vmem:[%s1530 + $0xc] sm:$0xf]
    %v1539 = vunpack.c.l.b16 %v1531
    %v1540 = vunpack.c.l.b16 %v1532
    %v1541 = vunpack.c.l.b16 %v1533
    %v1542 = vunpack.c.l.b16 %v1534
    %v1543 = vpack.c.b16 %v1540, %v1539
    %v1544 = vpack.c.b16 %v1542, %v1541
    %v1546 = vsel %vm92, %v1543, 0
    %v1549 = vsel %vm92, %v1544, 0
    %1551 = vmatprep.subr.bf16.mxu0 %v85
    %1552 = vmatpush1.bf16.msra.mxu0 %v84
    %1553 = vmatprep.subr.bf16.mxu0 %v87
    %1554 = vmatpush1.bf16.msra.mxu0 %v86
    %1555 = vmatprep.subr.bf16.mxu0 0
    %1556 = vmatpush1.bf16.msra.mxu0 0
    %1557 = vmatprep.subr.bf16.mxu0 0
    %1558 = vmatpush1.bf16.msra.mxu0 0
    %1559 = vmatprep.subr.bf16.mxu0 0
    %1560 = vmatpush1.bf16.msra.mxu0 0
    %1561 = vmatprep.subr.bf16.mxu0 0
    %1562 = vmatpush1.bf16.msra.mxu0 0
    %1563 = vmatprep.subr.bf16.mxu0 0
    %1564 = vmatpush1.bf16.msra.mxu0 0
    %1565 = vmatprep.subr.bf16.mxu0 0
    %1566 = vmatpush1.bf16.msra.mxu0 0
    %1567 = vmatprep.subr.bf16.mxu0 0
    %1568 = vmatpush1.bf16.msra.mxu0 0
    %1569 = vmatprep.subr.bf16.mxu0 0
    %1570 = vmatpush1.bf16.msra.mxu0 0
    %1571 = vmatprep.subr.bf16.mxu0 0
    %1572 = vmatpush1.bf16.msra.mxu0 0
    %1573 = vmatprep.subr.bf16.mxu0 0
    %1574 = vmatpush1.bf16.msra.mxu0 0
    %1575 = vmatprep.subr.bf16.mxu0 0
    %1576 = vmatpush1.bf16.msra.mxu0 0
    %1577 = vmatprep.subr.bf16.mxu0 0
    %1578 = vmatpush1.bf16.msra.mxu0 0
    %1579 = vmatprep.subr.bf16.mxu0 0
    %1580 = vmatpush1.bf16.msra.mxu0 0
    %1581 = vmatprep.subr.bf16.mxu0 0
    %1582 = vmatpush1.bf16.msra.mxu0 0
    %1583 = vmatprep.mubr.bf16.mxu0 0
    %1584 = vmatmul.mubr.bf16.gmra.mrb[0].mxu0 %v1546
    %v1585 = vpop.f32.mrb[0].mxu0
    %v1586 = vadd.f32 0.0, %v1585
    %v1587 = vpop.f32.mrb[0].mxu0
    %v1588 = vadd.f32 0.0, %v1587
    %v1589 = vpop.f32.mrb[0].mxu0
    %v1590 = vadd.f32 0.0, %v1589
    %v1591 = vpop.f32.mrb[0].mxu0
    %v1592 = vadd.f32 0.0, %v1591
    %1593 = vmatprep.mubr.bf16.mxu0 0
    %1594 = vmatmul.mubr.bf16.gmra.mrb[0].mxu0 %v1549
    %v1595 = vpop.f32.mrb[0].mxu0
    %v1596 = vadd.f32 0.0, %v1595
    %v1597 = vpop.f32.mrb[0].mxu0
    %v1598 = vadd.f32 0.0, %v1597
    %v1599 = vpop.f32.mrb[0].mxu0
    %v1600 = vadd.f32 0.0, %v1599
    %v1601 = vpop.f32.mrb[0].mxu0
    %v1602 = vadd.f32 0.0, %v1601
    %1603 = vdwg.mxu0
    %v1604 = vadd.f32 %v1522, %v1586
    %v1605 = vadd.f32 %v1523, %v1588
    %v1606 = vadd.f32 %v1524, %v1590
    %v1607 = vadd.f32 %v1525, %v1592
    %v1608 = vadd.f32 %v1526, %v1596
    %v1609 = vadd.f32 %v1527, %v1598
    %v1610 = vadd.f32 %v1528, %v1600
    %v1611 = vadd.f32 %v1529, %v1602
    %s1612 = scalar_lea.vmem %s2, 160
    %v1613 = vld [vmem:[%s1612] sm:$0xff]
    %v1614 = vld [vmem:[%s1612 + $0x8] sm:$0xff]
    %v1615 = vld [vmem:[%s1612 + $0x10] sm:$0xff]
    %v1616 = vld [vmem:[%s1612 + $0x18] sm:$0xff]
    %1618 = vset.pattern.permute.xlu0 0
    %1619 = vperm.xlu0 %1618, %v1613
    %v1620 = vpop.permute.xlu0 %1619
    %1623 = vset.pattern.permute.xlu0 0
    %1624 = vperm.xlu0 %1623, %v1614
    %v1625 = vpop.permute.xlu0 %1624
    %1628 = vset.pattern.permute.xlu0 0
    %1629 = vperm.xlu0 %1628, %v1615
    %v1630 = vpop.permute.xlu0 %1629
    %1633 = vset.pattern.permute.xlu0 0
    %1634 = vperm.xlu0 %1633, %v1616
    %v1635 = vpop.permute.xlu0 %1634
    %v1637 = vadd.f32 %v1604, %v1620
    %v1638 = vadd.f32 %v1605, %v1620
    %v1639 = vadd.f32 %v1606, %v1625
    %v1640 = vadd.f32 %v1607, %v1625
    %v1641 = vadd.f32 %v1608, %v1630
    %v1642 = vadd.f32 %v1609, %v1630
    %v1643 = vadd.f32 %v1610, %v1635
    %v1644 = vadd.f32 %v1611, %v1635
    %s1645 = scalar_lea.vmem %s3, 128
    %v1646 = vld [vmem:[%s1645] sm:$0xf]
    %v1647 = vld [vmem:[%s1645 + $0x4] sm:$0xf]
    %v1648 = vld [vmem:[%s1645 + $0x8] sm:$0xf]
    %v1649 = vld [vmem:[%s1645 + $0xc] sm:$0xf]
    %v1650 = vmax.f32 %v1637, 0.0
    %v1651 = vmax.f32 %v1638, 0.0
    %v1652 = vmax.f32 %v1639, 0.0
    %v1653 = vmax.f32 %v1640, 0.0
    %v1654 = vmax.f32 %v1641, 0.0
    %v1655 = vmax.f32 %v1642, 0.0
    %v1656 = vmax.f32 %v1643, 0.0
    %v1657 = vmax.f32 %v1644, 0.0
    %v1658 = vpack.c.bf16 %v1652, %v1650
    %v1659 = vpack.c.bf16 %v1653, %v1651
    %v1660 = vpack.c.bf16 %v1656, %v1654
    %v1661 = vpack.c.bf16 %v1657, %v1655
    %s1662 = scalar_lea.vmem %s4, 256
    %v1663 = vld [vmem:[%s1662] sm:$0xff]
    %v1664 = vld [vmem:[%s1662 + $0x8] sm:$0xff]
    %v1665 = vld [vmem:[%s1662 + $0x10] sm:$0xff]
    %v1666 = vld [vmem:[%s1662 + $0x18] sm:$0xff]
    %1668 = vset.pattern.permute.xlu0 0
    %1669 = vperm.xlu0 %1668, %v1663
    %v1670 = vpop.permute.xlu0 %1669
    %1673 = vset.pattern.permute.xlu0 0
    %1674 = vperm.xlu0 %1673, %v1664
    %v1675 = vpop.permute.xlu0 %1674
    %1678 = vset.pattern.permute.xlu0 0
    %1679 = vperm.xlu0 %1678, %v1665
    %v1680 = vpop.permute.xlu0 %1679
    %1683 = vset.pattern.permute.xlu0 0
    %1684 = vperm.xlu0 %1683, %v1666
    %v1685 = vpop.permute.xlu0 %1684
    %v1691 = vunpack.c.l.b16 %v1646
    %v1692 = vunpack.c.l.b16 %v1647
    %v1693 = vunpack.c.l.b16 %v1648
    %v1694 = vunpack.c.l.b16 %v1649
    %v1695 = vpack.c.b16 %v1692, %v1691
    %v1696 = vpack.c.b16 %v1694, %v1693
    %v1698 = vsel %vm92, %v1695, 0
    %v1701 = vsel %vm92, %v1696, 0
    %1703 = vmatprep.subr.bf16.mxu0 %v1659
    %1704 = vmatpush1.bf16.msra.mxu0 %v1658
    %1705 = vmatprep.subr.bf16.mxu0 %v1661
    %1706 = vmatpush1.bf16.msra.mxu0 %v1660
    %1707 = vmatprep.subr.bf16.mxu0 0
    %1708 = vmatpush1.bf16.msra.mxu0 0
    %1709 = vmatprep.subr.bf16.mxu0 0
    %1710 = vmatpush1.bf16.msra.mxu0 0
    %1711 = vmatprep.subr.bf16.mxu0 0
    %1712 = vmatpush1.bf16.msra.mxu0 0
    %1713 = vmatprep.subr.bf16.mxu0 0
    %1714 = vmatpush1.bf16.msra.mxu0 0
    %1715 = vmatprep.subr.bf16.mxu0 0
    %1716 = vmatpush1.bf16.msra.mxu0 0
    %1717 = vmatprep.subr.bf16.mxu0 0
    %1718 = vmatpush1.bf16.msra.mxu0 0
    %1719 = vmatprep.subr.bf16.mxu0 0
    %1720 = vmatpush1.bf16.msra.mxu0 0
    %1721 = vmatprep.subr.bf16.mxu0 0
    %1722 = vmatpush1.bf16.msra.mxu0 0
    %1723 = vmatprep.subr.bf16.mxu0 0
    %1724 = vmatpush1.bf16.msra.mxu0 0
    %1725 = vmatprep.subr.bf16.mxu0 0
    %1726 = vmatpush1.bf16.msra.mxu0 0
    %1727 = vmatprep.subr.bf16.mxu0 0
    %1728 = vmatpush1.bf16.msra.mxu0 0
    %1729 = vmatprep.subr.bf16.mxu0 0
    %1730 = vmatpush1.bf16.msra.mxu0 0
    %1731 = vmatprep.subr.bf16.mxu0 0
    %1732 = vmatpush1.bf16.msra.mxu0 0
    %1733 = vmatprep.subr.bf16.mxu0 0
    %1734 = vmatpush1.bf16.msra.mxu0 0
    %1735 = vmatprep.mubr.bf16.mxu0 0
    %1736 = vmatmul.mubr.bf16.gmra.mrb[0].mxu0 %v1698
    %v1737 = vpop.f32.mrb[0].mxu0
    %v1738 = vadd.f32 %v1670, %v1737
    %v1739 = vpop.f32.mrb[0].mxu0
    %v1740 = vadd.f32 %v1670, %v1739
    %v1741 = vpop.f32.mrb[0].mxu0
    %v1742 = vadd.f32 %v1675, %v1741
    %v1743 = vpop.f32.mrb[0].mxu0
    %v1744 = vadd.f32 %v1675, %v1743
    %1745 = vmatprep.mubr.bf16.mxu0 0
    %1746 = vmatmul.mubr.bf16.gmra.mrb[0].mxu0 %v1701
    %v1747 = vpop.f32.mrb[0].mxu0
    %v1748 = vadd.f32 %v1680, %v1747
    %v1749 = vpop.f32.mrb[0].mxu0
    %v1750 = vadd.f32 %v1680, %v1749
    %v1751 = vpop.f32.mrb[0].mxu0
    %v1752 = vadd.f32 %v1685, %v1751
    %v1753 = vpop.f32.mrb[0].mxu0
    %v1754 = vadd.f32 %v1685, %v1753
    %1755 = vdwg.mxu0
    %s1756 = scalar_lea.vmem %s3, 144
    %v1757 = vld [vmem:[%s1756] sm:$0xf]
    %v1758 = vld [vmem:[%s1756 + $0x4] sm:$0xf]
    %v1759 = vld [vmem:[%s1756 + $0x8] sm:$0xf]
    %v1760 = vld [vmem:[%s1756 + $0xc] sm:$0xf]
    %v1761 = vmax.f32 %v1738, 0.0
    %v1762 = vmax.f32 %v1740, 0.0
    %v1763 = vmax.f32 %v1742, 0.0
    %v1764 = vmax.f32 %v1744, 0.0
    %v1765 = vmax.f32 %v1748, 0.0
    %v1766 = vmax.f32 %v1750, 0.0
    %v1767 = vmax.f32 %v1752, 0.0
    %v1768 = vmax.f32 %v1754, 0.0
    %v1769 = vpack.c.bf16 %v1763, %v1761
    %v1770 = vpack.c.bf16 %v1764, %v1762
    %v1771 = vpack.c.bf16 %v1767, %v1765
    %v1772 = vpack.c.bf16 %v1768, %v1766
    %s1773 = scalar_lea.vmem %s4, 288
    %v1774 = vld [vmem:[%s1773] sm:$0xff]
    %v1775 = vld [vmem:[%s1773 + $0x8] sm:$0xff]
    %v1776 = vld [vmem:[%s1773 + $0x10] sm:$0xff]
    %v1777 = vld [vmem:[%s1773 + $0x18] sm:$0xff]
    %1779 = vset.pattern.permute.xlu0 0
    %1780 = vperm.xlu0 %1779, %v1774
    %v1781 = vpop.permute.xlu0 %1780
    %1784 = vset.pattern.permute.xlu0 0
    %1785 = vperm.xlu0 %1784, %v1775
    %v1786 = vpop.permute.xlu0 %1785
    %1789 = vset.pattern.permute.xlu0 0
    %1790 = vperm.xlu0 %1789, %v1776
    %v1791 = vpop.permute.xlu0 %1790
    %1794 = vset.pattern.permute.xlu0 0
    %1795 = vperm.xlu0 %1794, %v1777
    %v1796 = vpop.permute.xlu0 %1795
    %v1802 = vunpack.c.l.b16 %v1757
    %v1803 = vunpack.c.l.b16 %v1758
    %v1804 = vunpack.c.l.b16 %v1759
    %v1805 = vunpack.c.l.b16 %v1760
    %v1806 = vpack.c.b16 %v1803, %v1802
    %v1807 = vpack.c.b16 %v1805, %v1804
    %v1809 = vsel %vm92, %v1806, 0
    %v1812 = vsel %vm92, %v1807, 0
    %1814 = vmatprep.subr.bf16.mxu0 %v1770
    %1815 = vmatpush1.bf16.msra.mxu0 %v1769
    %1816 = vmatprep.subr.bf16.mxu0 %v1772
    %1817 = vmatpush1.bf16.msra.mxu0 %v1771
    %1818 = vmatprep.subr.bf16.mxu0 0
    %1819 = vmatpush1.bf16.msra.mxu0 0
    %1820 = vmatprep.subr.bf16.mxu0 0
    %1821 = vmatpush1.bf16.msra.mxu0 0
    %1822 = vmatprep.subr.bf16.mxu0 0
    %1823 = vmatpush1.bf16.msra.mxu0 0
    %1824 = vmatprep.subr.bf16.mxu0 0
    %1825 = vmatpush1.bf16.msra.mxu0 0
    %1826 = vmatprep.subr.bf16.mxu0 0
    %1827 = vmatpush1.bf16.msra.mxu0 0
    %1828 = vmatprep.subr.bf16.mxu0 0
    %1829 = vmatpush1.bf16.msra.mxu0 0
    %1830 = vmatprep.subr.bf16.mxu0 0
    %1831 = vmatpush1.bf16.msra.mxu0 0
    %1832 = vmatprep.subr.bf16.mxu0 0
    %1833 = vmatpush1.bf16.msra.mxu0 0
    %1834 = vmatprep.subr.bf16.mxu0 0
    %1835 = vmatpush1.bf16.msra.mxu0 0
    %1836 = vmatprep.subr.bf16.mxu0 0
    %1837 = vmatpush1.bf16.msra.mxu0 0
    %1838 = vmatprep.subr.bf16.mxu0 0
    %1839 = vmatpush1.bf16.msra.mxu0 0
    %1840 = vmatprep.subr.bf16.mxu0 0
    %1841 = vmatpush1.bf16.msra.mxu0 0
    %1842 = vmatprep.subr.bf16.mxu0 0
    %1843 = vmatpush1.bf16.msra.mxu0 0
    %1844 = vmatprep.subr.bf16.mxu0 0
    %1845 = vmatpush1.bf16.msra.mxu0 0
    %1846 = vmatprep.mubr.bf16.mxu0 0
    %1847 = vmatmul.mubr.bf16.gmra.mrb[0].mxu0 %v1809
    %v1848 = vpop.f32.mrb[0].mxu0
    %v1849 = vadd.f32 %v1781, %v1848
    %v1850 = vpop.f32.mrb[0].mxu0
    %v1851 = vadd.f32 %v1781, %v1850
    %v1852 = vpop.f32.mrb[0].mxu0
    %v1853 = vadd.f32 %v1786, %v1852
    %v1854 = vpop.f32.mrb[0].mxu0
    %v1855 = vadd.f32 %v1786, %v1854
    %1856 = vmatprep.mubr.bf16.mxu0 0
    %1857 = vmatmul.mubr.bf16.gmra.mrb[0].mxu0 %v1812
    %v1858 = vpop.f32.mrb[0].mxu0
    %v1859 = vadd.f32 %v1791, %v1858
    %v1860 = vpop.f32.mrb[0].mxu0
    %v1861 = vadd.f32 %v1791, %v1860
    %v1862 = vpop.f32.mrb[0].mxu0
    %v1863 = vadd.f32 %v1796, %v1862
    %v1864 = vpop.f32.mrb[0].mxu0
    %v1865 = vadd.f32 %v1796, %v1864
    %1866 = vdwg.mxu0
    %v1867 = vadd.f32 %v1637, %v1849
    %v1868 = vadd.f32 %v1638, %v1851
    %v1869 = vadd.f32 %v1639, %v1853
    %v1870 = vadd.f32 %v1640, %v1855
    %v1871 = vadd.f32 %v1641, %v1859
    %v1872 = vadd.f32 %v1642, %v1861
    %v1873 = vadd.f32 %v1643, %v1863
    %v1874 = vadd.f32 %v1644, %v1865
    %v1875 = vld [vmem:[%s5] sm:$0x1]
    %v1876 = vmax.f32 %v1867, 0.0
    %v1877 = vmax.f32 %v1868, 0.0
    %v1878 = vmax.f32 %v1869, 0.0
    %v1879 = vmax.f32 %v1870, 0.0
    %v1880 = vmax.f32 %v1871, 0.0
    %v1881 = vmax.f32 %v1872, 0.0
    %v1882 = vmax.f32 %v1873, 0.0
    %v1883 = vmax.f32 %v1874, 0.0
    %v1884 = vpack.c.bf16 %v1878, %v1876
    %v1885 = vpack.c.bf16 %v1879, %v1877
    %v1886 = vpack.c.bf16 %v1882, %v1880
    %v1887 = vpack.c.bf16 %v1883, %v1881
    %v1888 = vld [vmem:[#allocation2] sm:$0x1]
    %1890 = vset.pattern.permute.xlu0 0
    %1891 = vperm.xlu0 %1890, %v1888
    %v1892 = vpop.permute.xlu0 %1891
    %v1894 = vlaneseq
    %v1895 = vshrl.u32 %v1894, 7
    %v1896 = vsub.s32 0, %v1895
    %v1897 = vrot.slane %v1892, %v1896
    %v1899 = vsel %vm92, %v1875, 0
    %1901 = vmatprep.subr.bf16.mxu0 %v1885
    %1902 = vmatpush1.bf16.msra.mxu0 %v1884
    %1903 = vmatprep.subr.bf16.mxu0 %v1887
    %1904 = vmatpush1.bf16.msra.mxu0 %v1886
    %1905 = vmatprep.subr.bf16.mxu0 0
    %1906 = vmatpush1.bf16.msra.mxu0 0
    %1907 = vmatprep.subr.bf16.mxu0 0
    %1908 = vmatpush1.bf16.msra.mxu0 0
    %1909 = vmatprep.subr.bf16.mxu0 0
    %1910 = vmatpush1.bf16.msra.mxu0 0
    %1911 = vmatprep.subr.bf16.mxu0 0
    %1912 = vmatpush1.bf16.msra.mxu0 0
    %1913 = vmatprep.subr.bf16.mxu0 0
    %1914 = vmatpush1.bf16.msra.mxu0 0
    %1915 = vmatprep.subr.bf16.mxu0 0
    %1916 = vmatpush1.bf16.msra.mxu0 0
    %1917 = vmatprep.subr.bf16.mxu0 0
    %1918 = vmatpush1.bf16.msra.mxu0 0
    %1919 = vmatprep.subr.bf16.mxu0 0
    %1920 = vmatpush1.bf16.msra.mxu0 0
    %1921 = vmatprep.subr.bf16.mxu0 0
    %1922 = vmatpush1.bf16.msra.mxu0 0
    %1923 = vmatprep.subr.bf16.mxu0 0
    %1924 = vmatpush1.bf16.msra.mxu0 0
    %1925 = vmatprep.subr.bf16.mxu0 0
    %1926 = vmatpush1.bf16.msra.mxu0 0
    %1927 = vmatprep.subr.bf16.mxu0 0
    %1928 = vmatpush1.bf16.msra.mxu0 0
    %1929 = vmatprep.subr.bf16.mxu0 0
    %1930 = vmatpush1.bf16.msra.mxu0 0
    %1931 = vmatprep.subr.bf16.mxu0 0
    %1932 = vmatpush1.bf16.msra.mxu0 0
    %1933 = vmatprep.mubr.bf16.mxu0 0
    %1934 = vmatmul.mubr.bf16.gmra.mrb[0].mxu0 %v1899
    %v1935 = vpop.f32.mrb[0].mxu0
    %v1936 = vadd.f32 %v1897, %v1935
    %v1937 = vpop.f32.mrb[0].mxu0
    %v1938 = vadd.f32 %v1897, %v1937
    %v1939 = vpop.f32.mrb[0].mxu0
    %v1940 = vpop.f32.mrb[0].mxu0
    %1941 = vdwg.mxu0
    %v1944 = vcombine.low %v1936, %v1938
    %v1946 = vunpack.c.l.s4 1966171168
    %v1947 = vunpack.c.0.s8 %v1946
    %v1948 = vlaneseq
    %v1949 = vshrl.u32 %v1948, 7
    %v1950 = vsub.s32 %v1947, %v1949
    %v1951 = vrot.slane %v1944, %v1950
    %v1953 = vunpack.c.l.s4 1966171168
    %v1954 = vunpack.c.0.s8 %v1953
    %v1955 = vlaneseq
    %v1956 = vshrl.u32 %v1955, 7
    %v1957 = vsub.s32 %v1954, %v1956
    %v1958 = vrot.slane %v1951, %v1957
    %v1960 = vlaneseq
    %vm1961 = vcmp.ge.s32.totalorder %v1960, 0
    %vm1962 = vcmp.lt.s32.totalorder %v1960, 256
    %vm1963 = vmand %vm1961, %vm1962
    %1964 = vst.msk [vmem:[#allocation3] sm:$0x3] %vm1963, %v1958
    // Predicated region
    $region30: #{tpu_custom_call.1} parent=1 // pred_check
      _
    $region31: #{tpu_custom_call.1} parent=1 // pred_check_branch
      %1966 = sbr.rel (0) target = $region33
    $region32: #{tpu_custom_call.1} parent=1 // pred_region
      %s1968 = ssub.s32 32, 32
      %1969 = vsyncadd [#allocation4], %s1968
      %s1971 = sshll.u32 [#allocation3], 4
      %s1972 = int_to_ptr.vmem [resolvable:$true] %s1971
      %1974 = dma.vmem_to_hbm [thread:$0]  %s1972, 32, %s7, [#allocation4]
    $region33: #{tpu_custom_call.1} parent=1 // pred_fallthru
      _
    // Predicated region
    $region34: #{tpu_custom_call.1} parent=1 // pred_check
      _
    $region35: #{tpu_custom_call.1} parent=1 // pred_check_branch
      %1976 = sbr.rel (0) target = $region37
    $region36: #{tpu_custom_call.1} parent=1 // pred_region
      %1977 = dma.done [#allocation4], 32
    $region37: #{tpu_custom_call.1} parent=1 // pred_fallthru
      _
    %1978 = vsyncpa [#allocation4], 1

</llo_original>
